<compile_context>
chip_gen: v7x
topology: tpu7x:2x2x1
jax: 0.10.0
libtpu: 0.0.40
codegen_flags: <defaults>
</compile_context>

<pallas_src>
import math
import numpy as np
import jax
import jax.numpy as jnp
from jax.experimental import pallas as pl
from jax.experimental.pallas import tpu as pltpu


# ----------------------------- host-side matrix builders --------------------

def _bilinear_matrix(out_size, in_size, scale):
    # PyTorch bilinear, align_corners=False: src = max((dst+0.5)/scale - 0.5, 0),
    # linear weights on (i0, i0+1), taps clamped to the border.
    dst = np.arange(out_size, dtype=np.float64)
    src = np.maximum((dst + 0.5) / scale - 0.5, 0.0)
    i0 = np.minimum(np.floor(src).astype(np.int64), in_size - 1)
    i1 = np.minimum(i0 + 1, in_size - 1)
    w1 = src - i0
    U = np.zeros((out_size, in_size), dtype=np.float32)
    U[np.arange(out_size), i0] += (1.0 - w1).astype(np.float32)
    U[np.arange(out_size), i1] += w1.astype(np.float32)
    return U


def _uw_kron(W, w, scale, ci):
    # kron(Uw^T, I_ci): (w*ci, W*ci); column interp in the (row, W*C) layout.
    uw = _bilinear_matrix(W, w, scale)
    return np.kron(uw.T, np.eye(ci, dtype=np.float32))


def _conv_kron(wt, W):
    # wt: (3, 3, cin, cout) with BN scale folded.  Returns (3, W*cin, W*cout)
    # matrices carrying the dx taps + zero padding in W so the 3x3 conv is
    # three lane-dense matmuls (one per dy) on (N*H, W*cin) row slabs.
    wt = np.asarray(wt, np.float32)
    cin, cout = wt.shape[2], wt.shape[3]
    m = np.zeros((3, W, W), np.float32)        # (dx, x_in, x_out)
    for dx in range(3):
        for xo in range(W):
            xi = xo + dx - 1
            if 0 <= xi < W:
                m[dx, xi, xo] = 1.0
    r = np.einsum('dpw,ydko->ypkwo', m, wt)    # (dy, x_in, cin, x_out, cout)
    return r.reshape(3, W * cin, W * cout)


def _vmem_limit_bytes():
    try:
        cap = int(pltpu.get_tpu_info().vmem_capacity_bytes)
        return int(min(cap * 3 // 4, 96 * 1024 * 1024))
    except Exception:
        return 32 * 1024 * 1024


# ----------------------------- fused decoder kernel -------------------------

def _make_decoder_kernel(N, shapes, Ho, Wo, nc):
    """Whole decoder in one grid step.

    Ref order:  fm_0 .. fm_L,
                [uwk, uh, rcat, brow] per level (deepest first),
                lm, uhf, lb(SMEM),  out.
    """
    L = len(shapes) - 1
    f32, bf16 = jnp.float32, jnp.bfloat16

    def kernel(*refs):
        n_fm = L + 1
        fm = refs[:n_fm]
        lvl = [refs[n_fm + 4 * j: n_fm + 4 * (j + 1)] for j in range(L)]
        lm_ref, uhf_ref, lb_ref = refs[n_fm + 4 * L: n_fm + 4 * L + 3]
        o_ref = refs[n_fm + 4 * L + 3]

        x = fm[L][...]                                   # coarse map (N,h,w*Ci)
        for j in range(L):
            i = L - j                                    # coarse level index
            H, W, Co = shapes[i - 1]
            h, w, Ci = shapes[i]
            uwk_ref, uh_ref, rcat_ref, brow_ref = lvl[j]
            skip = fm[i - 1][...]                        # (N, H, W*Co) f32

            # Bilinear 2x upsample of the coarse map, all in f32 (tiny matmuls;
            # the height pass contracts over h so it is done per batch image).
            ups = []
            for n in range(N):
                t = jnp.dot(x[n], uwk_ref[...],
                            preferred_element_type=f32)              # (h, W*Ci)
                ups.append(jnp.dot(uh_ref[...], t,
                                   preferred_element_type=f32)[None])  # (1,H,W*Ci)
            up = jnp.concatenate(ups, axis=0)            # (N, H, W*Ci)

            # Channel concat (skip | up) on lanes, then the conv's zero halo
            # rows — one padded slab per level, reused by all three dy taps.
            K = W * (Co + Ci)
            mid = jnp.concatenate([skip, up], axis=-1)   # (N, H, K)
            zrow = jnp.zeros((N, 1, K), f32)
            cat = jnp.concatenate([zrow, mid, zrow], axis=1)   # (N, H+2, K)

            # 3x3 conv = 3 batch-folded matmuls (one per dy tap), merged
            # skip+up contraction (K = W*(Co+Ci)), f32 accumulation.
            acc = jnp.zeros((N * H, W * Co), f32)
            for dy in range(3):
                slab = cat[:, dy:dy + H, :].reshape(N * H, K).astype(bf16)
                acc = acc + jnp.dot(slab, rcat_ref[dy],
                                    preferred_element_type=f32)

            # Folded-BN bias + ReLU epilogue; becomes next level's coarse map.
            x = jnp.maximum(acc + brow_ref[...], 0.0).reshape(N, H, W * Co)

        # 1x1 logit conv with the final width-upsample folded in host-side,
        # then the height upsample; written directly as NCHW (Wo on lanes).
        H0, W0, C0 = shapes[0]
        xf = x.reshape(N * H0, W0 * C0).astype(bf16)
        for c in range(nc):
            yw = jnp.dot(xf, lm_ref[c], preferred_element_type=f32)   # (N*H0,Wo)
            yw = yw.reshape(N, H0, Wo)
            for n in range(N):
                o_ref[n, c] = (jnp.dot(uhf_ref[...], yw[n],
                                       preferred_element_type=f32)
                               + lb_ref[c]).astype(o_ref.dtype)

    return kernel


# ----------------------------- Decoder ---------------------------------------

class Decoder:
    def __init__(self, encoder_dims, upscale, num_classes=1, seed=0):
        self.encoder_dims = list(encoder_dims)
        self.upscale = float(upscale)
        self.num_classes = int(num_classes)
        eps = 1e-5
        key = jax.random.PRNGKey(seed)
        self.w_skip, self.w_up, self.bias = [], [], []
        for i in range(1, len(encoder_dims)):
            co = encoder_dims[i - 1]                # skip channels == out channels
            ci = encoder_dims[i]                    # upsampled-branch channels
            cin = co + ci
            key, k1, k2, k3, k4, k5 = jax.random.split(key, 6)
            w = jax.random.normal(k1, (co, cin, 3, 3), jnp.float32) * 0.1   # OIHW
            gamma = 1.0 + 0.1 * jax.random.normal(k2, (co,), jnp.float32)
            beta = 0.1 * jax.random.normal(k3, (co,), jnp.float32)
            rmean = 0.1 * jax.random.normal(k4, (co,), jnp.float32)
            rvar = 1.0 + 0.1 * jax.random.uniform(k5, (co,), jnp.float32)
            scale = gamma / jnp.sqrt(rvar + eps)    # BatchNorm(eval) scale
            bias = beta - rmean * scale             # BatchNorm(eval) bias
            # OIHW -> (dy, dx, cin, cout), fold the BN scale into the weights.
            wt = jnp.transpose(w, (2, 3, 1, 0)) * scale[None, None, None, :]
            self.w_skip.append(np.asarray(wt[:, :, :co, :]))   # skip input chans
            self.w_up.append(np.asarray(wt[:, :, co:, :]))     # upsampled chans
            self.bias.append(np.asarray(bias))
        key, k1, k2 = jax.random.split(key, 3)
        c0 = encoder_dims[0]
        wl = jax.random.normal(k1, (num_classes, c0, 1, 1), jnp.float32) * 0.1
        self.logit_w = np.asarray(jnp.transpose(wl[:, :, 0, 0], (1, 0)))  # (c0,nc)
        self.logit_b = np.asarray(
            0.1 * jax.random.normal(k2, (num_classes,), jnp.float32))
        self._cache = {}   # (shape signature, N) -> (pallas callable, params)

    # --- build & cache the fused kernel + weight matrices per shape signature
    def _get_plan(self, shapes, N):
        key = (shapes, N)
        if key in self._cache:
            return self._cache[key]

        L = len(shapes) - 1
        nc = self.num_classes
        H0, W0, C0 = shapes[0]
        Ho = int(math.floor(H0 * self.upscale))
        Wo = int(math.floor(W0 * self.upscale))

        params = []
        flops = 0
        for j in range(L):
            i = L - j
            H, W, Co = shapes[i - 1]
            h, w, Ci = shapes[i]
            uwk = jnp.asarray(_uw_kron(W, w, 2.0, Ci), jnp.float32)
            uh = jnp.asarray(_bilinear_matrix(H, h, 2.0), jnp.float32)
            # skip/up branches merged along K: (3, W*(Co+Ci), W*Co)
            rcat = jnp.asarray(
                np.concatenate([_conv_kron(self.w_skip[i - 1], W),
                                _conv_kron(self.w_up[i - 1], W)], axis=1),
                jnp.bfloat16)
            brow = jnp.asarray(np.tile(self.bias[i - 1], W)[None, :], jnp.float32)
            params += [uwk, uh, rcat, brow]
            flops += 2 * N * (h * (w * Ci) * (W * Ci) + H * h * (W * Ci)
                              + 3 * H * (W * (Co + Ci)) * (W * Co))

        # 1x1 logit conv folded with the final width-upsample matrix.
        uwT = _bilinear_matrix(Wo, W0, self.upscale).T          # (W0, Wo)
        lm = np.einsum('wx,kc->cwkx', uwT, self.logit_w)
        lm = jnp.asarray(lm.reshape(nc, W0 * C0, Wo), jnp.bfloat16)
        uhf = jnp.asarray(_bilinear_matrix(Ho, H0, self.upscale), jnp.float32)
        lb = jnp.asarray(self.logit_b, jnp.float32)
        params += [lm, uhf, lb]
        flops += 2 * N * nc * (H0 * (W0 * C0) * Wo + Ho * H0 * Wo)

        kernel = _make_decoder_kernel(N, shapes, Ho, Wo, nc)

        def _full_spec(a):
            nd = a.ndim
            return pl.BlockSpec(tuple(int(d) for d in a.shape),
                                lambda i, _nd=nd: (0,) * _nd)

        fm_shapes = [(N, H, W * C) for (H, W, C) in shapes]
        in_specs = ([pl.BlockSpec(s, lambda i: (0, 0, 0)) for s in fm_shapes]
                    + [_full_spec(p) for p in params[:-1]]
                    + [pl.BlockSpec(memory_space=pltpu.MemorySpace.SMEM)])  # lb

        bytes_accessed = (sum(N * H * W * C for (H, W, C) in shapes) * 4
                          + sum(int(p.size) * p.dtype.itemsize for p in params)
                          + N * nc * Ho * Wo * 4)

        call = pl.pallas_call(
            kernel,
            out_shape=jax.ShapeDtypeStruct((N, nc, Ho, Wo), jnp.float32),
            grid=(1,),
            in_specs=in_specs,
            out_specs=pl.BlockSpec((N, nc, Ho, Wo), lambda i: (0, 0, 0, 0)),
            compiler_params=pltpu.CompilerParams(
                dimension_semantics=("arbitrary",),
                vmem_limit_bytes=_vmem_limit_bytes()),
            cost_estimate=pl.CostEstimate(flops=int(flops), transcendentals=0,
                                          bytes_accessed=int(bytes_accessed)),
        )
        plan = (call, params)
        self._cache[key] = plan
        return plan

    def __call__(self, feature_maps_nchw):
        # NCHW -> lane-dense (N, H, W*C) (free reshape of NHWC).
        N = int(feature_maps_nchw[0].shape[0])
        shapes, fms2d = [], []
        for f in feature_maps_nchw:
            n, c, hh, ww = f.shape
            shapes.append((int(hh), int(ww), int(c)))
            fms2d.append(jnp.transpose(f, (0, 2, 3, 1)).reshape(n, hh, ww * c))
        call, params = self._get_plan(tuple(shapes), N)
        return call(*fms2d, *params)


# ----------------------------- pure-JAX reference ----------------------------

def _ref_decoder(dec, feature_maps_nchw):
    fms = [jnp.transpose(f, (0, 2, 3, 1)) for f in feature_maps_nchw]   # NHWC
    for i in range(len(fms) - 1, 0, -1):
        x = fms[i]
        h, w = x.shape[1], x.shape[2]
        H, W = fms[i - 1].shape[1], fms[i - 1].shape[2]
        uh = jnp.asarray(_bilinear_matrix(H, h, 2.0))
        uw = jnp.asarray(_bilinear_matrix(W, w, 2.0))
        up = jnp.einsum('ah,nhwc->nawc', uh, x)
        up = jnp.einsum('bw,nawc->nabc', uw, up)
        f = jnp.concatenate([fms[i - 1], up], axis=-1)
        wt = jnp.asarray(np.concatenate([dec.w_skip[i - 1], dec.w_up[i - 1]],
                                        axis=2))
        y = jax.lax.conv_general_dilated(
            f, wt, window_strides=(1, 1), padding='SAME',
            dimension_numbers=('NHWC', 'HWIO', 'NHWC'))
        fms[i - 1] = jnp.maximum(y + jnp.asarray(dec.bias[i - 1]), 0.0)
    x = fms[0]
    logits = jnp.einsum('nhwc,ck->nhwk', x, jnp.asarray(dec.logit_w)) \
        + jnp.asarray(dec.logit_b)
    H, W = x.shape[1], x.shape[2]
    Ho = int(math.floor(H * dec.upscale))
    Wo = int(math.floor(W * dec.upscale))
    uh = jnp.asarray(_bilinear_matrix(Ho, H, dec.upscale))
    uw = jnp.asarray(_bilinear_matrix(Wo, W, dec.upscale))
    m = jnp.einsum('ah,nhwk->nawk', uh, logits)
    m = jnp.einsum('bw,nawk->nabk', uw, m)
    return jnp.transpose(m, (0, 3, 1, 2))


# ----------------------------- main ------------------------------------------

if __name__ == "__main__":
    key = jax.random.PRNGKey(0)
    encoder_dims = [4, 8, 16]
    upscale = 4
    N, H, W = 2, 16, 16

    feature_maps = []
    for lvl, c in enumerate(encoder_dims):
        key, sub = jax.random.split(key)
        feature_maps.append(
            jax.random.normal(sub, (N, c, H >> lvl, W >> lvl), jnp.float32))

    dec = Decoder(encoder_dims, upscale, num_classes=1, seed=0)
    mask = jax.block_until_ready(dec(feature_maps))

    assert mask.shape == (N, 1, H * upscale, W * upscale), mask.shape
    assert bool(jnp.all(jnp.isfinite(mask)))

    ref = jax.block_until_ready(_ref_decoder(dec, feature_maps))
    assert bool(jnp.allclose(mask, ref, atol=5e-2, rtol=5e-2)), \
        float(jnp.max(jnp.abs(mask - ref)))

    print("KERNEL_OK")
</pallas_src>

<mosaic_0001>
module attributes {stable_mosaic.version = 11 : i64} {
  func.func @kernel(%arg0: i32, %arg1: memref<2x16x64xf32, #tpu.memory_space<vmem>>, %arg2: memref<2x8x64xf32, #tpu.memory_space<vmem>>, %arg3: memref<2x4x64xf32, #tpu.memory_space<vmem>>, %arg4: memref<64x128xf32, #tpu.memory_space<vmem>>, %arg5: memref<8x4xf32, #tpu.memory_space<vmem>>, %arg6: memref<3x192x64xbf16, #tpu.memory_space<vmem>>, %arg7: memref<1x64xf32, #tpu.memory_space<vmem>>, %arg8: memref<64x128xf32, #tpu.memory_space<vmem>>, %arg9: memref<16x8xf32, #tpu.memory_space<vmem>>, %arg10: memref<3x192x64xbf16, #tpu.memory_space<vmem>>, %arg11: memref<1x64xf32, #tpu.memory_space<vmem>>, %arg12: memref<1x64x64xbf16, #tpu.memory_space<vmem>>, %arg13: memref<64x16xf32, #tpu.memory_space<vmem>>, %arg14: memref<1xf32, #tpu.memory_space<smem>>, %arg15: memref<2x1x64x64xf32, #tpu.memory_space<vmem>>) attributes {dimension_semantics = [#tpu.dimension_semantics<arbitrary>], iteration_bounds = array<i64: 1>, scalar_prefetch = 0 : i64, scratch_operands = 0 : i64, tpu.core_type = #tpu.core_type<tc>, window_params = [{pipeline_mode = #tpu.pipeline_mode<synchronous>, transform_indices = @transform_0, window_bounds = array<i64: 2, 16, 64>}, {pipeline_mode = #tpu.pipeline_mode<synchronous>, transform_indices = @transform_1, window_bounds = array<i64: 2, 8, 64>}, {pipeline_mode = #tpu.pipeline_mode<synchronous>, transform_indices = @transform_2, window_bounds = array<i64: 2, 4, 64>}, {pipeline_mode = #tpu.pipeline_mode<synchronous>, transform_indices = @transform_3, window_bounds = array<i64: 64, 128>}, {pipeline_mode = #tpu.pipeline_mode<synchronous>, transform_indices = @transform_4, window_bounds = array<i64: 8, 4>}, {pipeline_mode = #tpu.pipeline_mode<synchronous>, transform_indices = @transform_5, window_bounds = array<i64: 3, 192, 64>}, {pipeline_mode = #tpu.pipeline_mode<synchronous>, transform_indices = @transform_6, window_bounds = array<i64: 1, 64>}, {pipeline_mode = #tpu.pipeline_mode<synchronous>, transform_indices = @transform_7, window_bounds = array<i64: 64, 128>}, {pipeline_mode = #tpu.pipeline_mode<synchronous>, transform_indices = @transform_8, window_bounds = array<i64: 16, 8>}, {pipeline_mode = #tpu.pipeline_mode<synchronous>, transform_indices = @transform_9, window_bounds = array<i64: 3, 192, 64>}, {pipeline_mode = #tpu.pipeline_mode<synchronous>, transform_indices = @transform_10, window_bounds = array<i64: 1, 64>}, {pipeline_mode = #tpu.pipeline_mode<synchronous>, transform_indices = @transform_11, window_bounds = array<i64: 1, 64, 64>}, {pipeline_mode = #tpu.pipeline_mode<synchronous>, transform_indices = @transform_12, window_bounds = array<i64: 64, 16>}, {transform_indices = @transform_13, window_bounds = array<i64: 1>}, {pipeline_mode = #tpu.pipeline_mode<synchronous>, transform_indices = @transform_14, window_bounds = array<i64: 2, 1, 64, 64>}]} {
    %c0 = arith.constant 0 : index
    %c0_0 = arith.constant 0 : index
    %c0_1 = arith.constant 0 : index
    %0 = vector.load %arg3[%c0, %c0_0, %c0_1] : memref<2x4x64xf32, #tpu.memory_space<vmem>>, vector<2x4x64xf32>
    %c0_2 = arith.constant 0 : index
    %c0_3 = arith.constant 0 : index
    %c0_4 = arith.constant 0 : index
    %1 = vector.load %arg2[%c0_2, %c0_3, %c0_4] : memref<2x8x64xf32, #tpu.memory_space<vmem>>, vector<2x8x64xf32>
    %2 = vector.extract_strided_slice %0 {offsets = [0, 0, 0], sizes = [1, 4, 64], strides = [1, 1, 1]} : vector<2x4x64xf32> to vector<1x4x64xf32>
    %3 = vector.shape_cast %2 : vector<1x4x64xf32> to vector<4x64xf32>
    %c0_5 = arith.constant 0 : index
    %c0_6 = arith.constant 0 : index
    %4 = vector.load %arg4[%c0_5, %c0_6] : memref<64x128xf32, #tpu.memory_space<vmem>>, vector<64x128xf32>
    %cst = arith.constant dense<0.000000e+00> : vector<4x128xf32>
    %5 = tpu.matmul %3, %4, %cst {dimension_numbers = #tpu.dot_dimension_numbers<[1], [0], [0], [1], [0, 0, 1, 1], [], []>} : vector<4x64xf32>, vector<64x128xf32>, vector<4x128xf32> -> vector<4x128xf32>
    %c0_7 = arith.constant 0 : index
    %c0_8 = arith.constant 0 : index
    %6 = vector.load %arg5[%c0_7, %c0_8] : memref<8x4xf32, #tpu.memory_space<vmem>>, vector<8x4xf32>
    %cst_9 = arith.constant dense<0.000000e+00> : vector<8x128xf32>
    %7 = tpu.matmul %6, %5, %cst_9 {dimension_numbers = #tpu.dot_dimension_numbers<[1], [0], [0], [1], [0, 0, 1, 1], [], []>} : vector<8x4xf32>, vector<4x128xf32>, vector<8x128xf32> -> vector<8x128xf32>
    %8 = vector.shape_cast %7 : vector<8x128xf32> to vector<1x8x128xf32>
    %9 = vector.extract_strided_slice %0 {offsets = [1, 0, 0], sizes = [1, 4, 64], strides = [1, 1, 1]} : vector<2x4x64xf32> to vector<1x4x64xf32>
    %10 = vector.shape_cast %9 : vector<1x4x64xf32> to vector<4x64xf32>
    %c0_10 = arith.constant 0 : index
    %c0_11 = arith.constant 0 : index
    %11 = vector.load %arg4[%c0_10, %c0_11] : memref<64x128xf32, #tpu.memory_space<vmem>>, vector<64x128xf32>
    %cst_12 = arith.constant dense<0.000000e+00> : vector<4x128xf32>
    %12 = tpu.matmul %10, %11, %cst_12 {dimension_numbers = #tpu.dot_dimension_numbers<[1], [0], [0], [1], [0, 0, 1, 1], [], []>} : vector<4x64xf32>, vector<64x128xf32>, vector<4x128xf32> -> vector<4x128xf32>
    %c0_13 = arith.constant 0 : index
    %c0_14 = arith.constant 0 : index
    %13 = vector.load %arg5[%c0_13, %c0_14] : memref<8x4xf32, #tpu.memory_space<vmem>>, vector<8x4xf32>
    %cst_15 = arith.constant dense<0.000000e+00> : vector<8x128xf32>
    %14 = tpu.matmul %13, %12, %cst_15 {dimension_numbers = #tpu.dot_dimension_numbers<[1], [0], [0], [1], [0, 0, 1, 1], [], []>} : vector<8x4xf32>, vector<4x128xf32>, vector<8x128xf32> -> vector<8x128xf32>
    %15 = vector.shape_cast %14 : vector<8x128xf32> to vector<1x8x128xf32>
    %16 = tpu.concatenate %8, %15 in 0 : vector<1x8x128xf32>, vector<1x8x128xf32> -> vector<2x8x128xf32>
    %17 = tpu.concatenate %1, %16 in 2 : vector<2x8x64xf32>, vector<2x8x128xf32> -> vector<2x8x192xf32>
    %cst_16 = arith.constant 0.000000e+00 : f32
    %18 = vector.broadcast %cst_16 : f32 to vector<2x1x192xf32>
    %19 = tpu.concatenate %18, %17, %18 in 1 : vector<2x1x192xf32>, vector<2x8x192xf32>, vector<2x1x192xf32> -> vector<2x10x192xf32>
    %cst_17 = arith.constant 0.000000e+00 : f32
    %20 = vector.broadcast %cst_17 : f32 to vector<16x64xf32>
    %21 = vector.extract_strided_slice %19 {offsets = [0, 0, 0], sizes = [2, 8, 192], strides = [1, 1, 1]} : vector<2x10x192xf32> to vector<2x8x192xf32>
    %22 = vector.shape_cast %21 : vector<2x8x192xf32> to vector<16x192xf32>
    %23 = arith.truncf %22 : vector<16x192xf32> to vector<16x192xbf16>
    %c0_18 = arith.constant 0 : index
    %c0_19 = arith.constant 0 : index
    %c0_20 = arith.constant 0 : index
    %24 = vector.load %arg6[%c0_18, %c0_19, %c0_20] : memref<3x192x64xbf16, #tpu.memory_space<vmem>>, vector<1x192x64xbf16>
    %25 = vector.shape_cast %24 : vector<1x192x64xbf16> to vector<192x64xbf16>
    %cst_21 = arith.constant dense<0.000000e+00> : vector<16x64xf32>
    %26 = tpu.matmul %23, %25, %cst_21 {dimension_numbers = #tpu.dot_dimension_numbers<[1], [0], [0], [1], [0, 0, 1, 1], [], []>} : vector<16x192xbf16>, vector<192x64xbf16>, vector<16x64xf32> -> vector<16x64xf32>
    %27 = arith.addf %20, %26 : vector<16x64xf32>
    %28 = vector.extract_strided_slice %19 {offsets = [0, 1, 0], sizes = [2, 8, 192], strides = [1, 1, 1]} : vector<2x10x192xf32> to vector<2x8x192xf32>
    %29 = vector.shape_cast %28 : vector<2x8x192xf32> to vector<16x192xf32>
    %30 = arith.truncf %29 : vector<16x192xf32> to vector<16x192xbf16>
    %c1 = arith.constant 1 : index
    %c0_22 = arith.constant 0 : index
    %c0_23 = arith.constant 0 : index
    %31 = vector.load %arg6[%c1, %c0_22, %c0_23] : memref<3x192x64xbf16, #tpu.memory_space<vmem>>, vector<1x192x64xbf16>
    %32 = vector.shape_cast %31 : vector<1x192x64xbf16> to vector<192x64xbf16>
    %cst_24 = arith.constant dense<0.000000e+00> : vector<16x64xf32>
    %33 = tpu.matmul %30, %32, %cst_24 {dimension_numbers = #tpu.dot_dimension_numbers<[1], [0], [0], [1], [0, 0, 1, 1], [], []>} : vector<16x192xbf16>, vector<192x64xbf16>, vector<16x64xf32> -> vector<16x64xf32>
    %34 = arith.addf %27, %33 : vector<16x64xf32>
    %35 = vector.extract_strided_slice %19 {offsets = [0, 2, 0], sizes = [2, 8, 192], strides = [1, 1, 1]} : vector<2x10x192xf32> to vector<2x8x192xf32>
    %36 = vector.shape_cast %35 : vector<2x8x192xf32> to vector<16x192xf32>
    %37 = arith.truncf %36 : vector<16x192xf32> to vector<16x192xbf16>
    %c2 = arith.constant 2 : index
    %c0_25 = arith.constant 0 : index
    %c0_26 = arith.constant 0 : index
    %38 = vector.load %arg6[%c2, %c0_25, %c0_26] : memref<3x192x64xbf16, #tpu.memory_space<vmem>>, vector<1x192x64xbf16>
    %39 = vector.shape_cast %38 : vector<1x192x64xbf16> to vector<192x64xbf16>
    %cst_27 = arith.constant dense<0.000000e+00> : vector<16x64xf32>
    %40 = tpu.matmul %37, %39, %cst_27 {dimension_numbers = #tpu.dot_dimension_numbers<[1], [0], [0], [1], [0, 0, 1, 1], [], []>} : vector<16x192xbf16>, vector<192x64xbf16>, vector<16x64xf32> -> vector<16x64xf32>
    %41 = arith.addf %34, %40 : vector<16x64xf32>
    %c0_28 = arith.constant 0 : index
    %c0_29 = arith.constant 0 : index
    %42 = vector.load %arg7[%c0_28, %c0_29] : memref<1x64xf32, #tpu.memory_space<vmem>>, vector<1x64xf32>
    %43 = vector.broadcast %42 : vector<1x64xf32> to vector<16x64xf32>
    %44 = arith.addf %41, %43 : vector<16x64xf32>
    %cst_30 = arith.constant 0.000000e+00 : f32
    %45 = vector.broadcast %cst_30 : f32 to vector<16x64xf32>
    %46 = arith.maximumf %44, %45 : vector<16x64xf32>
    %47 = vector.shape_cast %46 : vector<16x64xf32> to vector<2x8x64xf32>
    %c0_31 = arith.constant 0 : index
    %c0_32 = arith.constant 0 : index
    %c0_33 = arith.constant 0 : index
    %48 = vector.load %arg1[%c0_31, %c0_32, %c0_33] : memref<2x16x64xf32, #tpu.memory_space<vmem>>, vector<2x16x64xf32>
    %49 = vector.extract_strided_slice %47 {offsets = [0, 0, 0], sizes = [1, 8, 64], strides = [1, 1, 1]} : vector<2x8x64xf32> to vector<1x8x64xf32>
    %50 = vector.shape_cast %49 : vector<1x8x64xf32> to vector<8x64xf32>
    %c0_34 = arith.constant 0 : index
    %c0_35 = arith.constant 0 : index
    %51 = vector.load %arg8[%c0_34, %c0_35] : memref<64x128xf32, #tpu.memory_space<vmem>>, vector<64x128xf32>
    %cst_36 = arith.constant dense<0.000000e+00> : vector<8x128xf32>
    %52 = tpu.matmul %50, %51, %cst_36 {dimension_numbers = #tpu.dot_dimension_numbers<[1], [0], [0], [1], [0, 0, 1, 1], [], []>} : vector<8x64xf32>, vector<64x128xf32>, vector<8x128xf32> -> vector<8x128xf32>
    %c0_37 = arith.constant 0 : index
    %c0_38 = arith.constant 0 : index
    %53 = vector.load %arg9[%c0_37, %c0_38] : memref<16x8xf32, #tpu.memory_space<vmem>>, vector<16x8xf32>
    %cst_39 = arith.constant dense<0.000000e+00> : vector<16x128xf32>
    %54 = tpu.matmul %53, %52, %cst_39 {dimension_numbers = #tpu.dot_dimension_numbers<[1], [0], [0], [1], [0, 0, 1, 1], [], []>} : vector<16x8xf32>, vector<8x128xf32>, vector<16x128xf32> -> vector<16x128xf32>
    %55 = vector.shape_cast %54 : vector<16x128xf32> to vector<1x16x128xf32>
    %56 = vector.extract_strided_slice %47 {offsets = [1, 0, 0], sizes = [1, 8, 64], strides = [1, 1, 1]} : vector<2x8x64xf32> to vector<1x8x64xf32>
    %57 = vector.shape_cast %56 : vector<1x8x64xf32> to vector<8x64xf32>
    %c0_40 = arith.constant 0 : index
    %c0_41 = arith.constant 0 : index
    %58 = vector.load %arg8[%c0_40, %c0_41] : memref<64x128xf32, #tpu.memory_space<vmem>>, vector<64x128xf32>
    %cst_42 = arith.constant dense<0.000000e+00> : vector<8x128xf32>
    %59 = tpu.matmul %57, %58, %cst_42 {dimension_numbers = #tpu.dot_dimension_numbers<[1], [0], [0], [1], [0, 0, 1, 1], [], []>} : vector<8x64xf32>, vector<64x128xf32>, vector<8x128xf32> -> vector<8x128xf32>
    %c0_43 = arith.constant 0 : index
    %c0_44 = arith.constant 0 : index
    %60 = vector.load %arg9[%c0_43, %c0_44] : memref<16x8xf32, #tpu.memory_space<vmem>>, vector<16x8xf32>
    %cst_45 = arith.constant dense<0.000000e+00> : vector<16x128xf32>
    %61 = tpu.matmul %60, %59, %cst_45 {dimension_numbers = #tpu.dot_dimension_numbers<[1], [0], [0], [1], [0, 0, 1, 1], [], []>} : vector<16x8xf32>, vector<8x128xf32>, vector<16x128xf32> -> vector<16x128xf32>
    %62 = vector.shape_cast %61 : vector<16x128xf32> to vector<1x16x128xf32>
    %63 = tpu.concatenate %55, %62 in 0 : vector<1x16x128xf32>, vector<1x16x128xf32> -> vector<2x16x128xf32>
    %64 = tpu.concatenate %48, %63 in 2 : vector<2x16x64xf32>, vector<2x16x128xf32> -> vector<2x16x192xf32>
    %cst_46 = arith.constant 0.000000e+00 : f32
    %65 = vector.broadcast %cst_46 : f32 to vector<2x1x192xf32>
    %66 = tpu.concatenate %65, %64, %65 in 1 : vector<2x1x192xf32>, vector<2x16x192xf32>, vector<2x1x192xf32> -> vector<2x18x192xf32>
    %cst_47 = arith.constant 0.000000e+00 : f32
    %67 = vector.broadcast %cst_47 : f32 to vector<32x64xf32>
    %68 = vector.extract_strided_slice %66 {offsets = [0, 0, 0], sizes = [2, 16, 192], strides = [1, 1, 1]} : vector<2x18x192xf32> to vector<2x16x192xf32>
    %69 = vector.shape_cast %68 : vector<2x16x192xf32> to vector<32x192xf32>
    %70 = arith.truncf %69 : vector<32x192xf32> to vector<32x192xbf16>
    %c0_48 = arith.constant 0 : index
    %c0_49 = arith.constant 0 : index
    %c0_50 = arith.constant 0 : index
    %71 = vector.load %arg10[%c0_48, %c0_49, %c0_50] : memref<3x192x64xbf16, #tpu.memory_space<vmem>>, vector<1x192x64xbf16>
    %72 = vector.shape_cast %71 : vector<1x192x64xbf16> to vector<192x64xbf16>
    %cst_51 = arith.constant dense<0.000000e+00> : vector<32x64xf32>
    %73 = tpu.matmul %70, %72, %cst_51 {dimension_numbers = #tpu.dot_dimension_numbers<[1], [0], [0], [1], [0, 0, 1, 1], [], []>} : vector<32x192xbf16>, vector<192x64xbf16>, vector<32x64xf32> -> vector<32x64xf32>
    %74 = arith.addf %67, %73 : vector<32x64xf32>
    %75 = vector.extract_strided_slice %66 {offsets = [0, 1, 0], sizes = [2, 16, 192], strides = [1, 1, 1]} : vector<2x18x192xf32> to vector<2x16x192xf32>
    %76 = vector.shape_cast %75 : vector<2x16x192xf32> to vector<32x192xf32>
    %77 = arith.truncf %76 : vector<32x192xf32> to vector<32x192xbf16>
    %c1_52 = arith.constant 1 : index
    %c0_53 = arith.constant 0 : index
    %c0_54 = arith.constant 0 : index
    %78 = vector.load %arg10[%c1_52, %c0_53, %c0_54] : memref<3x192x64xbf16, #tpu.memory_space<vmem>>, vector<1x192x64xbf16>
    %79 = vector.shape_cast %78 : vector<1x192x64xbf16> to vector<192x64xbf16>
    %cst_55 = arith.constant dense<0.000000e+00> : vector<32x64xf32>
    %80 = tpu.matmul %77, %79, %cst_55 {dimension_numbers = #tpu.dot_dimension_numbers<[1], [0], [0], [1], [0, 0, 1, 1], [], []>} : vector<32x192xbf16>, vector<192x64xbf16>, vector<32x64xf32> -> vector<32x64xf32>
    %81 = arith.addf %74, %80 : vector<32x64xf32>
    %82 = vector.extract_strided_slice %66 {offsets = [0, 2, 0], sizes = [2, 16, 192], strides = [1, 1, 1]} : vector<2x18x192xf32> to vector<2x16x192xf32>
    %83 = vector.shape_cast %82 : vector<2x16x192xf32> to vector<32x192xf32>
    %84 = arith.truncf %83 : vector<32x192xf32> to vector<32x192xbf16>
    %c2_56 = arith.constant 2 : index
    %c0_57 = arith.constant 0 : index
    %c0_58 = arith.constant 0 : index
    %85 = vector.load %arg10[%c2_56, %c0_57, %c0_58] : memref<3x192x64xbf16, #tpu.memory_space<vmem>>, vector<1x192x64xbf16>
    %86 = vector.shape_cast %85 : vector<1x192x64xbf16> to vector<192x64xbf16>
    %cst_59 = arith.constant dense<0.000000e+00> : vector<32x64xf32>
    %87 = tpu.matmul %84, %86, %cst_59 {dimension_numbers = #tpu.dot_dimension_numbers<[1], [0], [0], [1], [0, 0, 1, 1], [], []>} : vector<32x192xbf16>, vector<192x64xbf16>, vector<32x64xf32> -> vector<32x64xf32>
    %88 = arith.addf %81, %87 : vector<32x64xf32>
    %c0_60 = arith.constant 0 : index
    %c0_61 = arith.constant 0 : index
    %89 = vector.load %arg11[%c0_60, %c0_61] : memref<1x64xf32, #tpu.memory_space<vmem>>, vector<1x64xf32>
    %90 = vector.broadcast %89 : vector<1x64xf32> to vector<32x64xf32>
    %91 = arith.addf %88, %90 : vector<32x64xf32>
    %cst_62 = arith.constant 0.000000e+00 : f32
    %92 = vector.broadcast %cst_62 : f32 to vector<32x64xf32>
    %93 = arith.maximumf %91, %92 : vector<32x64xf32>
    %94 = vector.shape_cast %93 : vector<32x64xf32> to vector<2x16x64xf32>
    %95 = vector.shape_cast %94 : vector<2x16x64xf32> to vector<32x64xf32>
    %96 = arith.truncf %95 : vector<32x64xf32> to vector<32x64xbf16>
    %c0_63 = arith.constant 0 : index
    %c0_64 = arith.constant 0 : index
    %c0_65 = arith.constant 0 : index
    %97 = vector.load %arg12[%c0_63, %c0_64, %c0_65] : memref<1x64x64xbf16, #tpu.memory_space<vmem>>, vector<1x64x64xbf16>
    %98 = vector.shape_cast %97 : vector<1x64x64xbf16> to vector<64x64xbf16>
    %cst_66 = arith.constant dense<0.000000e+00> : vector<32x64xf32>
    %99 = tpu.matmul %96, %98, %cst_66 {dimension_numbers = #tpu.dot_dimension_numbers<[1], [0], [0], [1], [0, 0, 1, 1], [], []>} : vector<32x64xbf16>, vector<64x64xbf16>, vector<32x64xf32> -> vector<32x64xf32>
    %100 = vector.shape_cast %99 : vector<32x64xf32> to vector<2x16x64xf32>
    %c0_67 = arith.constant 0 : index
    %c0_68 = arith.constant 0 : index
    %101 = vector.load %arg13[%c0_67, %c0_68] : memref<64x16xf32, #tpu.memory_space<vmem>>, vector<64x16xf32>
    %102 = vector.extract_strided_slice %100 {offsets = [0, 0, 0], sizes = [1, 16, 64], strides = [1, 1, 1]} : vector<2x16x64xf32> to vector<1x16x64xf32>
    %103 = vector.shape_cast %102 : vector<1x16x64xf32> to vector<16x64xf32>
    %cst_69 = arith.constant dense<0.000000e+00> : vector<64x64xf32>
    %104 = tpu.matmul %101, %103, %cst_69 {dimension_numbers = #tpu.dot_dimension_numbers<[1], [0], [0], [1], [0, 0, 1, 1], [], []>} : vector<64x16xf32>, vector<16x64xf32>, vector<64x64xf32> -> vector<64x64xf32>
    %c0_70 = arith.constant 0 : index
    %105 = memref.load %arg14[%c0_70] : memref<1xf32, #tpu.memory_space<smem>>
    %106 = vector.broadcast %105 : f32 to vector<64x64xf32>
    %107 = arith.addf %104, %106 : vector<64x64xf32>
    %c0_71 = arith.constant 0 : index
    %c0_72 = arith.constant 0 : index
    %c0_73 = arith.constant 0 : index
    %c0_74 = arith.constant 0 : index
    %108 = vector.load %arg15[%c0_71, %c0_72, %c0_73, %c0_74] : memref<2x1x64x64xf32, #tpu.memory_space<vmem>>, vector<1x1x64x64xf32>
    %109 = vector.shape_cast %108 : vector<1x1x64x64xf32> to vector<64x64xf32>
    %110 = vector.shape_cast %107 : vector<64x64xf32> to vector<1x1x64x64xf32>
    tpu.vector_store %arg15[%c0_71, %c0_72, %c0_73, %c0_74], %110 {strides = array<i32>} : memref<2x1x64x64xf32, #tpu.memory_space<vmem>>, vector<1x1x64x64xf32>,
    %c0_75 = arith.constant 0 : index
    %c0_76 = arith.constant 0 : index
    %111 = vector.load %arg13[%c0_75, %c0_76] : memref<64x16xf32, #tpu.memory_space<vmem>>, vector<64x16xf32>
    %112 = vector.extract_strided_slice %100 {offsets = [1, 0, 0], sizes = [1, 16, 64], strides = [1, 1, 1]} : vector<2x16x64xf32> to vector<1x16x64xf32>
    %113 = vector.shape_cast %112 : vector<1x16x64xf32> to vector<16x64xf32>
    %cst_77 = arith.constant dense<0.000000e+00> : vector<64x64xf32>
    %114 = tpu.matmul %111, %113, %cst_77 {dimension_numbers = #tpu.dot_dimension_numbers<[1], [0], [0], [1], [0, 0, 1, 1], [], []>} : vector<64x16xf32>, vector<16x64xf32>, vector<64x64xf32> -> vector<64x64xf32>
    %c0_78 = arith.constant 0 : index
    %115 = memref.load %arg14[%c0_78] : memref<1xf32, #tpu.memory_space<smem>>
    %116 = vector.broadcast %115 : f32 to vector<64x64xf32>
    %117 = arith.addf %114, %116 : vector<64x64xf32>
    %c1_79 = arith.constant 1 : index
    %c0_80 = arith.constant 0 : index
    %c0_81 = arith.constant 0 : index
    %c0_82 = arith.constant 0 : index
    %118 = vector.load %arg15[%c1_79, %c0_80, %c0_81, %c0_82] : memref<2x1x64x64xf32, #tpu.memory_space<vmem>>, vector<1x1x64x64xf32>
    %119 = vector.shape_cast %118 : vector<1x1x64x64xf32> to vector<64x64xf32>
    %120 = vector.shape_cast %117 : vector<64x64xf32> to vector<1x1x64x64xf32>
    tpu.vector_store %arg15[%c1_79, %c0_80, %c0_81, %c0_82], %120 {strides = array<i32>} : memref<2x1x64x64xf32, #tpu.memory_space<vmem>>, vector<1x1x64x64xf32>,
    return
  }
  func.func @transform_0(%arg0: i32) -> (i32, i32, i32) {
    %c0_i32 = arith.constant 0 : i32
    %c0_i32_0 = arith.constant 0 : i32
    %c0_i32_1 = arith.constant 0 : i32
    %c0_i32_2 = arith.constant 0 : i32
    return %c0_i32, %c0_i32_0, %c0_i32_1 : i32, i32, i32
  }
  func.func @transform_1(%arg0: i32) -> (i32, i32, i32) {
    %c0_i32 = arith.constant 0 : i32
    %c0_i32_0 = arith.constant 0 : i32
    %c0_i32_1 = arith.constant 0 : i32
    %c0_i32_2 = arith.constant 0 : i32
    return %c0_i32, %c0_i32_0, %c0_i32_1 : i32, i32, i32
  }
  func.func @transform_2(%arg0: i32) -> (i32, i32, i32) {
    %c0_i32 = arith.constant 0 : i32
    %c0_i32_0 = arith.constant 0 : i32
    %c0_i32_1 = arith.constant 0 : i32
    %c0_i32_2 = arith.constant 0 : i32
    return %c0_i32, %c0_i32_0, %c0_i32_1 : i32, i32, i32
  }
  func.func @transform_3(%arg0: i32) -> (i32, i32) {
    %c0_i32 = arith.constant 0 : i32
    %c0_i32_0 = arith.constant 0 : i32
    %c0_i32_1 = arith.constant 0 : i32
    return %c0_i32, %c0_i32_0 : i32, i32
  }
  func.func @transform_4(%arg0: i32) -> (i32, i32) {
    %c0_i32 = arith.constant 0 : i32
    %c0_i32_0 = arith.constant 0 : i32
    %c0_i32_1 = arith.constant 0 : i32
    return %c0_i32, %c0_i32_0 : i32, i32
  }
  func.func @transform_5(%arg0: i32) -> (i32, i32, i32) {
    %c0_i32 = arith.constant 0 : i32
    %c0_i32_0 = arith.constant 0 : i32
    %c0_i32_1 = arith.constant 0 : i32
    %c0_i32_2 = arith.constant 0 : i32
    return %c0_i32, %c0_i32_0, %c0_i32_1 : i32, i32, i32
  }
  func.func @transform_6(%arg0: i32) -> (i32, i32) {
    %c0_i32 = arith.constant 0 : i32
    %c0_i32_0 = arith.constant 0 : i32
    %c0_i32_1 = arith.constant 0 : i32
    return %c0_i32, %c0_i32_0 : i32, i32
  }
  func.func @transform_7(%arg0: i32) -> (i32, i32) {
    %c0_i32 = arith.constant 0 : i32
    %c0_i32_0 = arith.constant 0 : i32
    %c0_i32_1 = arith.constant 0 : i32
    return %c0_i32, %c0_i32_0 : i32, i32
  }
  func.func @transform_8(%arg0: i32) -> (i32, i32) {
    %c0_i32 = arith.constant 0 : i32
    %c0_i32_0 = arith.constant 0 : i32
    %c0_i32_1 = arith.constant 0 : i32
    return %c0_i32, %c0_i32_0 : i32, i32
  }
  func.func @transform_9(%arg0: i32) -> (i32, i32, i32) {
    %c0_i32 = arith.constant 0 : i32
    %c0_i32_0 = arith.constant 0 : i32
    %c0_i32_1 = arith.constant 0 : i32
    %c0_i32_2 = arith.constant 0 : i32
    return %c0_i32, %c0_i32_0, %c0_i32_1 : i32, i32, i32
  }
  func.func @transform_10(%arg0: i32) -> (i32, i32) {
    %c0_i32 = arith.constant 0 : i32
    %c0_i32_0 = arith.constant 0 : i32
    %c0_i32_1 = arith.constant 0 : i32
    return %c0_i32, %c0_i32_0 : i32, i32
  }
  func.func @transform_11(%arg0: i32) -> (i32, i32, i32) {
    %c0_i32 = arith.constant 0 : i32
    %c0_i32_0 = arith.constant 0 : i32
    %c0_i32_1 = arith.constant 0 : i32
    %c0_i32_2 = arith.constant 0 : i32
    return %c0_i32, %c0_i32_0, %c0_i32_1 : i32, i32, i32
  }
  func.func @transform_12(%arg0: i32) -> (i32, i32) {
    %c0_i32 = arith.constant 0 : i32
    %c0_i32_0 = arith.constant 0 : i32
    %c0_i32_1 = arith.constant 0 : i32
    return %c0_i32, %c0_i32_0 : i32, i32
  }
  func.func @transform_13(%arg0: i32) -> i32 {
    %c0_i32 = arith.constant 0 : i32
    %c0_i32_0 = arith.constant 0 : i32
    return %c0_i32 : i32
  }
  func.func @transform_14(%arg0: i32) -> (i32, i32, i32, i32) {
    %c0_i32 = arith.constant 0 : i32
    %c0_i32_0 = arith.constant 0 : i32
    %c0_i32_1 = arith.constant 0 : i32
    %c0_i32_2 = arith.constant 0 : i32
    %c0_i32_3 = arith.constant 0 : i32
    return %c0_i32, %c0_i32_0, %c0_i32_1, %c0_i32_2 : i32, i32, i32, i32
  }
}

</mosaic_0001>

<llo_original>
// kernel: tpu_custom_call.1
$region0: #{tpu_custom_call.1}
  #allocation0 [shape = 'u32[]', space=smem, size = 0x4, offset = 0x4, fixed_abs, tag = 'smem constant byte address 0x4 - core index']
  #allocation1 [shape = 'u32[144,128]{1,0:T(1,128)}', space=vmem, size = 0x12000, scoped, tag = 'internal scratch']
  #allocation2 [shape = 'f32[1]{0:T(128)S(6)}', space=smem, size = 0x200, scoped, tag = 'scoped memory for tpu_custom_call.1']
  %s0 = inlined_call_operand.vmem [shape: f32[2,16,64], index: 0, kind: input, shape index: {}]
  %s1 = inlined_call_operand.vmem [shape: f32[2,8,64], index: 1, kind: input, shape index: {}]
  %s2 = inlined_call_operand.vmem [shape: f32[2,4,64], index: 2, kind: input, shape index: {}]
  %s3 = inlined_call_operand.vmem [shape: f32[64,128], index: 3, kind: input, shape index: {}]
  %s4 = inlined_call_operand.vmem [shape: f32[8,4], index: 4, kind: input, shape index: {}]
  %s5 = inlined_call_operand.vmem [shape: bf16[3,192,64], index: 5, kind: input, shape index: {}]
  %s6 = inlined_call_operand.vmem [shape: f32[1,64], index: 6, kind: input, shape index: {}]
  %s7 = inlined_call_operand.vmem [shape: f32[64,128], index: 7, kind: input, shape index: {}]
  %s8 = inlined_call_operand.vmem [shape: f32[16,8], index: 8, kind: input, shape index: {}]
  %s9 = inlined_call_operand.vmem [shape: bf16[3,192,64], index: 9, kind: input, shape index: {}]
  %s10 = inlined_call_operand.vmem [shape: f32[1,64], index: 10, kind: input, shape index: {}]
  %s11 = inlined_call_operand.vmem [shape: bf16[1,64,64], index: 11, kind: input, shape index: {}]
  %s12 = inlined_call_operand.vmem [shape: f32[64,16], index: 12, kind: input, shape index: {}]
  %s13 = inlined_call_operand.<no memory space> [shape: f32[1], index: 13, kind: input, shape index: {}]
  %s14 = inlined_call_operand.hbm [shape: f32[2,1,64,64], index: 14, kind: output, shape index: {}]
  %s15 = sld [smem:[#allocation0]]
  $region66: #{tpu_custom_call.1} parent=0
    _
  %s17 = ssub.s32 1, %s15
  %s18 = scalar_select 0, %s17, %s15
  %19 = sst [smem:[#allocation2]] %s13
  $region1: #{tpu_custom_call.1} parent=0
    #allocation3 [shape = 'u8[65536]{0}', space=vmem, size = 0x10000, scoped, tag = 'output window, operand 0, single buffered']
    #allocation4 [shape = 's32[1]{0}', space=sflag, size = 0x4, scoped, tag = 'scoped memory for tpu_custom_call.1']
    %20 = vsyncpa [#allocation4], 0
    // Predicated region
    $region2: #{tpu_custom_call.1} parent=1 // pred_check
      _
    $region3: #{tpu_custom_call.1} parent=1 // pred_check_branch
      %22 = sbr.rel (0) target = $region5
    $region4: #{tpu_custom_call.1} parent=1 // pred_region
      _
    $region5: #{tpu_custom_call.1} parent=1 // pred_fallthru
      _
    // Predicated region
    $region6: #{tpu_custom_call.1} parent=1 // pred_check
      _
    $region7: #{tpu_custom_call.1} parent=1 // pred_check_branch
      %24 = sbr.rel (0) target = $region9
    $region8: #{tpu_custom_call.1} parent=1 // pred_region
      _
    $region9: #{tpu_custom_call.1} parent=1 // pred_fallthru
      _
    // Predicated region
    $region10: #{tpu_custom_call.1} parent=1 // pred_check
      _
    $region11: #{tpu_custom_call.1} parent=1 // pred_check_branch
      %26 = sbr.rel (0) target = $region13
    $region12: #{tpu_custom_call.1} parent=1 // pred_region
      _
    $region13: #{tpu_custom_call.1} parent=1 // pred_fallthru
      _
    // Predicated region
    $region14: #{tpu_custom_call.1} parent=1 // pred_check
      _
    $region15: #{tpu_custom_call.1} parent=1 // pred_check_branch
      %28 = sbr.rel (0) target = $region17
    $region16: #{tpu_custom_call.1} parent=1 // pred_region
      _
    $region17: #{tpu_custom_call.1} parent=1 // pred_fallthru
      _
    // Predicated region
    $region18: #{tpu_custom_call.1} parent=1 // pred_check
      _
    $region19: #{tpu_custom_call.1} parent=1 // pred_check_branch
      %30 = sbr.rel (0) target = $region21
    $region20: #{tpu_custom_call.1} parent=1 // pred_region
      _
    $region21: #{tpu_custom_call.1} parent=1 // pred_fallthru
      _
    // Predicated region
    $region22: #{tpu_custom_call.1} parent=1 // pred_check
      _
    $region23: #{tpu_custom_call.1} parent=1 // pred_check_branch
      %32 = sbr.rel (0) target = $region25
    $region24: #{tpu_custom_call.1} parent=1 // pred_region
      _
    $region25: #{tpu_custom_call.1} parent=1 // pred_fallthru
      _
    // Predicated region
    $region26: #{tpu_custom_call.1} parent=1 // pred_check
      _
    $region27: #{tpu_custom_call.1} parent=1 // pred_check_branch
      %34 = sbr.rel (0) target = $region29
    $region28: #{tpu_custom_call.1} parent=1 // pred_region
      _
    $region29: #{tpu_custom_call.1} parent=1 // pred_fallthru
      _
    // Predicated region
    $region30: #{tpu_custom_call.1} parent=1 // pred_check
      _
    $region31: #{tpu_custom_call.1} parent=1 // pred_check_branch
      %36 = sbr.rel (0) target = $region33
    $region32: #{tpu_custom_call.1} parent=1 // pred_region
      _
    $region33: #{tpu_custom_call.1} parent=1 // pred_fallthru
      _
    // Predicated region
    $region34: #{tpu_custom_call.1} parent=1 // pred_check
      _
    $region35: #{tpu_custom_call.1} parent=1 // pred_check_branch
      %38 = sbr.rel (0) target = $region37
    $region36: #{tpu_custom_call.1} parent=1 // pred_region
      _
    $region37: #{tpu_custom_call.1} parent=1 // pred_fallthru
      _
    // Predicated region
    $region38: #{tpu_custom_call.1} parent=1 // pred_check
      _
    $region39: #{tpu_custom_call.1} parent=1 // pred_check_branch
      %40 = sbr.rel (0) target = $region41
    $region40: #{tpu_custom_call.1} parent=1 // pred_region
      _
    $region41: #{tpu_custom_call.1} parent=1 // pred_fallthru
      _
    // Predicated region
    $region42: #{tpu_custom_call.1} parent=1 // pred_check
      _
    $region43: #{tpu_custom_call.1} parent=1 // pred_check_branch
      %42 = sbr.rel (0) target = $region45
    $region44: #{tpu_custom_call.1} parent=1 // pred_region
      _
    $region45: #{tpu_custom_call.1} parent=1 // pred_fallthru
      _
    // Predicated region
    $region46: #{tpu_custom_call.1} parent=1 // pred_check
      _
    $region47: #{tpu_custom_call.1} parent=1 // pred_check_branch
      %44 = sbr.rel (0) target = $region49
    $region48: #{tpu_custom_call.1} parent=1 // pred_region
      _
    $region49: #{tpu_custom_call.1} parent=1 // pred_fallthru
      _
    // Predicated region
    $region50: #{tpu_custom_call.1} parent=1 // pred_check
      _
    $region51: #{tpu_custom_call.1} parent=1 // pred_check_branch
      %46 = sbr.rel (0) target = $region53
    $region52: #{tpu_custom_call.1} parent=1 // pred_region
      _
    $region53: #{tpu_custom_call.1} parent=1 // pred_fallthru
      _
    // Predicated region
    $region54: #{tpu_custom_call.1} parent=1 // pred_check
      _
    $region55: #{tpu_custom_call.1} parent=1 // pred_check_branch
      %48 = sbr.rel (0) target = $region57
    $region56: #{tpu_custom_call.1} parent=1 // pred_region
      _
    $region57: #{tpu_custom_call.1} parent=1 // pred_fallthru
      _
    %v50 = vld [vmem:[%s2] sm:$0xf]
    %v51 = vld [vmem:[%s2 + $0x4] sm:$0xf]
    %v52 = vld [vmem:[%s1] sm:$0xff]
    %v53 = vld [vmem:[%s1 + $0x8] sm:$0xff]
    %v54 = vld [vmem:[%s3] sm:$0xff]
    %v55 = vld [vmem:[%s3 + $0x8] sm:$0xff]
    %v56 = vld [vmem:[%s3 + $0x10] sm:$0xff]
    %v57 = vld [vmem:[%s3 + $0x18] sm:$0xff]
    %v58 = vld [vmem:[%s3 + $0x20] sm:$0xff]
    %v59 = vld [vmem:[%s3 + $0x28] sm:$0xff]
    %v60 = vld [vmem:[%s3 + $0x30] sm:$0xff]
    %v61 = vld [vmem:[%s3 + $0x38] sm:$0xff]
    %vm62 = vcmask 523264
    %v64 = vsel %vm62, %v50, 0
    %66 = vmatprep.subr.mxu0 0.0
    %67 = vmatpush1.msra.mxu0 %v54
    %68 = vmatprep.subr.mxu0 0.0
    %69 = vmatpush1.msra.mxu0 %v55
    %70 = vmatprep.subr.mxu0 0.0
    %71 = vmatpush1.msra.mxu0 %v56
    %72 = vmatprep.subr.mxu0 0.0
    %73 = vmatpush1.msra.mxu0 %v57
    %74 = vmatprep.subr.mxu0 0.0
    %75 = vmatpush1.msra.mxu0 %v58
    %76 = vmatprep.subr.mxu0 0.0
    %77 = vmatpush1.msra.mxu0 %v59
    %78 = vmatprep.subr.mxu0 0.0
    %79 = vmatpush1.msra.mxu0 %v60
    %80 = vmatprep.subr.mxu0 0.0
    %81 = vmatpush1.msra.mxu0 %v61
    %82 = vmatprep.subr.mxu0 0.0
    %83 = vmatpush1.msra.mxu0 0.0
    %84 = vmatprep.subr.mxu0 0.0
    %85 = vmatpush1.msra.mxu0 0.0
    %86 = vmatprep.subr.mxu0 0.0
    %87 = vmatpush1.msra.mxu0 0.0
    %88 = vmatprep.subr.mxu0 0.0
    %89 = vmatpush1.msra.mxu0 0.0
    %90 = vmatprep.subr.mxu0 0.0
    %91 = vmatpush1.msra.mxu0 0.0
    %92 = vmatprep.subr.mxu0 0.0
    %93 = vmatpush1.msra.mxu0 0.0
    %94 = vmatprep.subr.mxu0 0.0
    %95 = vmatpush1.msra.mxu0 0.0
    %96 = vmatprep.subr.mxu0 0.0
    %97 = vmatpush1.msra.mxu0 0.0
    %98 = vmatprep.subr.mxu0 0.0
    %99 = vmatpush1.msra.mxu0 0.0
    %100 = vmatprep.subr.mxu0 0.0
    %101 = vmatpush1.msra.mxu0 0.0
    %102 = vmatprep.subr.mxu0 0.0
    %103 = vmatpush1.msra.mxu0 0.0
    %104 = vmatprep.subr.mxu0 0.0
    %105 = vmatpush1.msra.mxu0 0.0
    %106 = vmatprep.subr.mxu0 0.0
    %107 = vmatpush1.msra.mxu0 0.0
    %108 = vmatprep.subr.mxu0 0.0
    %109 = vmatpush1.msra.mxu0 0.0
    %110 = vmatprep.subr.mxu0 0.0
    %111 = vmatpush1.msra.mxu0 0.0
    %112 = vmatprep.subr.mxu0 0.0
    %113 = vmatpush1.msra.mxu0 0.0
    %114 = vmatprep.subr.mxu0 0.0
    %115 = vmatpush1.msra.mxu0 0.0
    %116 = vmatprep.subr.mxu0 0.0
    %117 = vmatpush1.msra.mxu0 0.0
    %118 = vmatprep.subr.mxu0 0.0
    %119 = vmatpush1.msra.mxu0 0.0
    %120 = vmatprep.subr.mxu0 0.0
    %121 = vmatpush1.msra.mxu0 0.0
    %122 = vmatprep.subr.mxu0 0.0
    %123 = vmatpush1.msra.mxu0 0.0
    %124 = vmatprep.subr.mxu0 0.0
    %125 = vmatpush1.msra.mxu0 0.0
    %126 = vmatprep.subr.mxu0 0.0
    %127 = vmatpush1.msra.mxu0 0.0
    %128 = vmatprep.subr.mxu0 0.0
    %129 = vmatpush1.msra.mxu0 0.0
    %130 = vmatprep.mubr.f32.mxu0 0.0
    %131 = vmatmul.mubr.f32.gmra.mrb[0].mxu0 %v64
    %v132 = vpop.f32.mrb[0].mxu0
    %v133 = vadd.f32 0.0, %v132
    %v134 = vpop.f32.mrb[0].mxu0
    %135 = vdwg.mxu0
    %v136 = vld [vmem:[%s4] sm:$0xff]
    %vm137 = vcmask 31744
    %v139 = vsel %vm137, %v136, 0
    %vm141 = vcmask 1043456
    %v143 = vsel %vm141, %v133, 0
    %145 = vmatprep.subr.mxu0 0.0
    %146 = vmatpush1.msra.mxu0 %v143
    %147 = vmatprep.subr.mxu0 0.0
    %148 = vmatpush1.msra.mxu0 0.0
    %149 = vmatprep.subr.mxu0 0.0
    %150 = vmatpush1.msra.mxu0 0.0
    %151 = vmatprep.subr.mxu0 0.0
    %152 = vmatpush1.msra.mxu0 0.0
    %153 = vmatprep.subr.mxu0 0.0
    %154 = vmatpush1.msra.mxu0 0.0
    %155 = vmatprep.subr.mxu0 0.0
    %156 = vmatpush1.msra.mxu0 0.0
    %157 = vmatprep.subr.mxu0 0.0
    %158 = vmatpush1.msra.mxu0 0.0
    %159 = vmatprep.subr.mxu0 0.0
    %160 = vmatpush1.msra.mxu0 0.0
    %161 = vmatprep.subr.mxu0 0.0
    %162 = vmatpush1.msra.mxu0 0.0
    %163 = vmatprep.subr.mxu0 0.0
    %164 = vmatpush1.msra.mxu0 0.0
    %165 = vmatprep.subr.mxu0 0.0
    %166 = vmatpush1.msra.mxu0 0.0
    %167 = vmatprep.subr.mxu0 0.0
    %168 = vmatpush1.msra.mxu0 0.0
    %169 = vmatprep.subr.mxu0 0.0
    %170 = vmatpush1.msra.mxu0 0.0
    %171 = vmatprep.subr.mxu0 0.0
    %172 = vmatpush1.msra.mxu0 0.0
    %173 = vmatprep.subr.mxu0 0.0
    %174 = vmatpush1.msra.mxu0 0.0
    %175 = vmatprep.subr.mxu0 0.0
    %176 = vmatpush1.msra.mxu0 0.0
    %177 = vmatprep.subr.mxu0 0.0
    %178 = vmatpush1.msra.mxu0 0.0
    %179 = vmatprep.subr.mxu0 0.0
    %180 = vmatpush1.msra.mxu0 0.0
    %181 = vmatprep.subr.mxu0 0.0
    %182 = vmatpush1.msra.mxu0 0.0
    %183 = vmatprep.subr.mxu0 0.0
    %184 = vmatpush1.msra.mxu0 0.0
    %185 = vmatprep.subr.mxu0 0.0
    %186 = vmatpush1.msra.mxu0 0.0
    %187 = vmatprep.subr.mxu0 0.0
    %188 = vmatpush1.msra.mxu0 0.0
    %189 = vmatprep.subr.mxu0 0.0
    %190 = vmatpush1.msra.mxu0 0.0
    %191 = vmatprep.subr.mxu0 0.0
    %192 = vmatpush1.msra.mxu0 0.0
    %193 = vmatprep.subr.mxu0 0.0
    %194 = vmatpush1.msra.mxu0 0.0
    %195 = vmatprep.subr.mxu0 0.0
    %196 = vmatpush1.msra.mxu0 0.0
    %197 = vmatprep.subr.mxu0 0.0
    %198 = vmatpush1.msra.mxu0 0.0
    %199 = vmatprep.subr.mxu0 0.0
    %200 = vmatpush1.msra.mxu0 0.0
    %201 = vmatprep.subr.mxu0 0.0
    %202 = vmatpush1.msra.mxu0 0.0
    %203 = vmatprep.subr.mxu0 0.0
    %204 = vmatpush1.msra.mxu0 0.0
    %205 = vmatprep.subr.mxu0 0.0
    %206 = vmatpush1.msra.mxu0 0.0
    %207 = vmatprep.subr.mxu0 0.0
    %208 = vmatpush1.msra.mxu0 0.0
    %209 = vmatprep.mubr.f32.mxu0 0.0
    %210 = vmatmul.mubr.f32.gmra.mrb[0].mxu0 %v139
    %v211 = vpop.f32.mrb[0].mxu0
    %v212 = vadd.f32 0.0, %v211
    %v213 = vpop.f32.mrb[0].mxu0
    %214 = vdwg.mxu0
    %v216 = vsel %vm62, %v51, 0
    %218 = vmatprep.subr.mxu0 0.0
    %219 = vmatpush1.msra.mxu0 %v54
    %220 = vmatprep.subr.mxu0 0.0
    %221 = vmatpush1.msra.mxu0 %v55
    %222 = vmatprep.subr.mxu0 0.0
    %223 = vmatpush1.msra.mxu0 %v56
    %224 = vmatprep.subr.mxu0 0.0
    %225 = vmatpush1.msra.mxu0 %v57
    %226 = vmatprep.subr.mxu0 0.0
    %227 = vmatpush1.msra.mxu0 %v58
    %228 = vmatprep.subr.mxu0 0.0
    %229 = vmatpush1.msra.mxu0 %v59
    %230 = vmatprep.subr.mxu0 0.0
    %231 = vmatpush1.msra.mxu0 %v60
    %232 = vmatprep.subr.mxu0 0.0
    %233 = vmatpush1.msra.mxu0 %v61
    %234 = vmatprep.subr.mxu0 0.0
    %235 = vmatpush1.msra.mxu0 0.0
    %236 = vmatprep.subr.mxu0 0.0
    %237 = vmatpush1.msra.mxu0 0.0
    %238 = vmatprep.subr.mxu0 0.0
    %239 = vmatpush1.msra.mxu0 0.0
    %240 = vmatprep.subr.mxu0 0.0
    %241 = vmatpush1.msra.mxu0 0.0
    %242 = vmatprep.subr.mxu0 0.0
    %243 = vmatpush1.msra.mxu0 0.0
    %244 = vmatprep.subr.mxu0 0.0
    %245 = vmatpush1.msra.mxu0 0.0
    %246 = vmatprep.subr.mxu0 0.0
    %247 = vmatpush1.msra.mxu0 0.0
    %248 = vmatprep.subr.mxu0 0.0
    %249 = vmatpush1.msra.mxu0 0.0
    %250 = vmatprep.subr.mxu0 0.0
    %251 = vmatpush1.msra.mxu0 0.0
    %252 = vmatprep.subr.mxu0 0.0
    %253 = vmatpush1.msra.mxu0 0.0
    %254 = vmatprep.subr.mxu0 0.0
    %255 = vmatpush1.msra.mxu0 0.0
    %256 = vmatprep.subr.mxu0 0.0
    %257 = vmatpush1.msra.mxu0 0.0
    %258 = vmatprep.subr.mxu0 0.0
    %259 = vmatpush1.msra.mxu0 0.0
    %260 = vmatprep.subr.mxu0 0.0
    %261 = vmatpush1.msra.mxu0 0.0
    %262 = vmatprep.subr.mxu0 0.0
    %263 = vmatpush1.msra.mxu0 0.0
    %264 = vmatprep.subr.mxu0 0.0
    %265 = vmatpush1.msra.mxu0 0.0
    %266 = vmatprep.subr.mxu0 0.0
    %267 = vmatpush1.msra.mxu0 0.0
    %268 = vmatprep.subr.mxu0 0.0
    %269 = vmatpush1.msra.mxu0 0.0
    %270 = vmatprep.subr.mxu0 0.0
    %271 = vmatpush1.msra.mxu0 0.0
    %272 = vmatprep.subr.mxu0 0.0
    %273 = vmatpush1.msra.mxu0 0.0
    %274 = vmatprep.subr.mxu0 0.0
    %275 = vmatpush1.msra.mxu0 0.0
    %276 = vmatprep.subr.mxu0 0.0
    %277 = vmatpush1.msra.mxu0 0.0
    %278 = vmatprep.subr.mxu0 0.0
    %279 = vmatpush1.msra.mxu0 0.0
    %280 = vmatprep.subr.mxu0 0.0
    %281 = vmatpush1.msra.mxu0 0.0
    %282 = vmatprep.mubr.f32.mxu0 0.0
    %283 = vmatmul.mubr.f32.gmra.mrb[0].mxu0 %v216
    %v284 = vpop.f32.mrb[0].mxu0
    %v285 = vadd.f32 0.0, %v284
    %v286 = vpop.f32.mrb[0].mxu0
    %287 = vdwg.mxu0
    %v289 = vsel %vm141, %v285, 0
    %291 = vmatprep.subr.mxu0 0.0
    %292 = vmatpush1.msra.mxu0 %v289
    %293 = vmatprep.subr.mxu0 0.0
    %294 = vmatpush1.msra.mxu0 0.0
    %295 = vmatprep.subr.mxu0 0.0
    %296 = vmatpush1.msra.mxu0 0.0
    %297 = vmatprep.subr.mxu0 0.0
    %298 = vmatpush1.msra.mxu0 0.0
    %299 = vmatprep.subr.mxu0 0.0
    %300 = vmatpush1.msra.mxu0 0.0
    %301 = vmatprep.subr.mxu0 0.0
    %302 = vmatpush1.msra.mxu0 0.0
    %303 = vmatprep.subr.mxu0 0.0
    %304 = vmatpush1.msra.mxu0 0.0
    %305 = vmatprep.subr.mxu0 0.0
    %306 = vmatpush1.msra.mxu0 0.0
    %307 = vmatprep.subr.mxu0 0.0
    %308 = vmatpush1.msra.mxu0 0.0
    %309 = vmatprep.subr.mxu0 0.0
    %310 = vmatpush1.msra.mxu0 0.0
    %311 = vmatprep.subr.mxu0 0.0
    %312 = vmatpush1.msra.mxu0 0.0
    %313 = vmatprep.subr.mxu0 0.0
    %314 = vmatpush1.msra.mxu0 0.0
    %315 = vmatprep.subr.mxu0 0.0
    %316 = vmatpush1.msra.mxu0 0.0
    %317 = vmatprep.subr.mxu0 0.0
    %318 = vmatpush1.msra.mxu0 0.0
    %319 = vmatprep.subr.mxu0 0.0
    %320 = vmatpush1.msra.mxu0 0.0
    %321 = vmatprep.subr.mxu0 0.0
    %322 = vmatpush1.msra.mxu0 0.0
    %323 = vmatprep.subr.mxu0 0.0
    %324 = vmatpush1.msra.mxu0 0.0
    %325 = vmatprep.subr.mxu0 0.0
    %326 = vmatpush1.msra.mxu0 0.0
    %327 = vmatprep.subr.mxu0 0.0
    %328 = vmatpush1.msra.mxu0 0.0
    %329 = vmatprep.subr.mxu0 0.0
    %330 = vmatpush1.msra.mxu0 0.0
    %331 = vmatprep.subr.mxu0 0.0
    %332 = vmatpush1.msra.mxu0 0.0
    %333 = vmatprep.subr.mxu0 0.0
    %334 = vmatpush1.msra.mxu0 0.0
    %335 = vmatprep.subr.mxu0 0.0
    %336 = vmatpush1.msra.mxu0 0.0
    %337 = vmatprep.subr.mxu0 0.0
    %338 = vmatpush1.msra.mxu0 0.0
    %339 = vmatprep.subr.mxu0 0.0
    %340 = vmatpush1.msra.mxu0 0.0
    %341 = vmatprep.subr.mxu0 0.0
    %342 = vmatpush1.msra.mxu0 0.0
    %343 = vmatprep.subr.mxu0 0.0
    %344 = vmatpush1.msra.mxu0 0.0
    %345 = vmatprep.subr.mxu0 0.0
    %346 = vmatpush1.msra.mxu0 0.0
    %347 = vmatprep.subr.mxu0 0.0
    %348 = vmatpush1.msra.mxu0 0.0
    %349 = vmatprep.subr.mxu0 0.0
    %350 = vmatpush1.msra.mxu0 0.0
    %351 = vmatprep.subr.mxu0 0.0
    %352 = vmatpush1.msra.mxu0 0.0
    %353 = vmatprep.subr.mxu0 0.0
    %354 = vmatpush1.msra.mxu0 0.0
    %355 = vmatprep.mubr.f32.mxu0 0.0
    %356 = vmatmul.mubr.f32.gmra.mrb[0].mxu0 %v139
    %v357 = vpop.f32.mrb[0].mxu0
    %v358 = vadd.f32 0.0, %v357
    %v359 = vpop.f32.mrb[0].mxu0
    %360 = vdwg.mxu0
    %363 = vrot.lane.b32.xlu0 %v212, 64
    %v364 = vpop.permute.xlu0 %363
    %365 = vrot.lane.b32.xlu0 %v358, 64
    %v366 = vpop.permute.xlu0 %365
    %v369 = vsel %vm62, %v52, %v364
    %v370 = vsel %vm62, %v53, %v366
    %v373 = vrot.slane %v369, 7
    %v374 = vrot.slane %v364, 7
    %v375 = vrot.slane %v370, 7
    %v376 = vrot.slane %v366, 7
    %vm381 = vcmask 1040384
    %v382 = vsel %vm381, 0.0, %v373
    %v383 = vsel %vm381, 0.0, %v374
    %v384 = vsel %vm381, 0.0, %v375
    %v385 = vsel %vm381, 0.0, %v376
    %v386 = vsel %vm381, %v373, 0.0
    %v387 = vsel %vm381, %v374, 0.0
    %v388 = vsel %vm381, %v375, 0.0
    %v389 = vsel %vm381, %v376, 0.0
    %v390 = vpack.c.bf16 %v384, %v382
    %v391 = vpack.c.bf16 %v385, %v383
    %v392 = vld [vmem:[%s5] sm:$0xf]
    %v393 = vld [vmem:[%s5 + $0x4] sm:$0xf]
    %v394 = vld [vmem:[%s5 + $0x8] sm:$0xf]
    %v395 = vld [vmem:[%s5 + $0xc] sm:$0xf]
    %v396 = vld [vmem:[%s5 + $0x10] sm:$0xf]
    %v397 = vld [vmem:[%s5 + $0x14] sm:$0xf]
    %v398 = vld [vmem:[%s5 + $0x18] sm:$0xf]
    %v399 = vld [vmem:[%s5 + $0x1c] sm:$0xf]
    %v400 = vld [vmem:[%s5 + $0x20] sm:$0xf]
    %v401 = vld [vmem:[%s5 + $0x24] sm:$0xf]
    %v402 = vld [vmem:[%s5 + $0x28] sm:$0xf]
    %v403 = vld [vmem:[%s5 + $0x2c] sm:$0xf]
    %v404 = vld [vmem:[%s5 + $0x30] sm:$0xf]
    %v405 = vld [vmem:[%s5 + $0x34] sm:$0xf]
    %v406 = vld [vmem:[%s5 + $0x38] sm:$0xf]
    %v407 = vld [vmem:[%s5 + $0x3c] sm:$0xf]
    %v408 = vld [vmem:[%s5 + $0x40] sm:$0xf]
    %v409 = vld [vmem:[%s5 + $0x44] sm:$0xf]
    %v410 = vld [vmem:[%s5 + $0x48] sm:$0xf]
    %v411 = vld [vmem:[%s5 + $0x4c] sm:$0xf]
    %v412 = vld [vmem:[%s5 + $0x50] sm:$0xf]
    %v413 = vld [vmem:[%s5 + $0x54] sm:$0xf]
    %v414 = vld [vmem:[%s5 + $0x58] sm:$0xf]
    %v415 = vld [vmem:[%s5 + $0x5c] sm:$0xf]
    %vm424 = vcmask 1046528
    %v425 = vrot.slane %v382, 1
    %v426 = vrot.slane %v386, 1
    %v427 = vsel %vm424, %v425, %v426
    %v428 = vrot.slane %v383, 1
    %v429 = vrot.slane %v387, 1
    %v430 = vsel %vm424, %v428, %v429
    %v431 = vrot.slane %v384, 1
    %v432 = vrot.slane %v388, 1
    %v433 = vsel %vm424, %v431, %v432
    %v434 = vrot.slane %v385, 1
    %v435 = vrot.slane %v389, 1
    %v436 = vsel %vm424, %v434, %v435
    %v441 = vpack.c.bf16 %v433, %v427
    %v442 = vpack.c.bf16 %v436, %v430
    %s443 = scalar_lea.vmem %s5, 96
    %v444 = vld [vmem:[%s443] sm:$0xf]
    %v445 = vld [vmem:[%s443 + $0x4] sm:$0xf]
    %v446 = vld [vmem:[%s443 + $0x8] sm:$0xf]
    %v447 = vld [vmem:[%s443 + $0xc] sm:$0xf]
    %v448 = vld [vmem:[%s443 + $0x10] sm:$0xf]
    %v449 = vld [vmem:[%s443 + $0x14] sm:$0xf]
    %v450 = vld [vmem:[%s443 + $0x18] sm:$0xf]
    %v451 = vld [vmem:[%s443 + $0x1c] sm:$0xf]
    %v452 = vld [vmem:[%s443 + $0x20] sm:$0xf]
    %v453 = vld [vmem:[%s443 + $0x24] sm:$0xf]
    %v454 = vld [vmem:[%s443 + $0x28] sm:$0xf]
    %v455 = vld [vmem:[%s443 + $0x2c] sm:$0xf]
    %v456 = vld [vmem:[%s443 + $0x30] sm:$0xf]
    %v457 = vld [vmem:[%s443 + $0x34] sm:$0xf]
    %v458 = vld [vmem:[%s443 + $0x38] sm:$0xf]
    %v459 = vld [vmem:[%s443 + $0x3c] sm:$0xf]
    %v460 = vld [vmem:[%s443 + $0x40] sm:$0xf]
    %v461 = vld [vmem:[%s443 + $0x44] sm:$0xf]
    %v462 = vld [vmem:[%s443 + $0x48] sm:$0xf]
    %v463 = vld [vmem:[%s443 + $0x4c] sm:$0xf]
    %v464 = vld [vmem:[%s443 + $0x50] sm:$0xf]
    %v465 = vld [vmem:[%s443 + $0x54] sm:$0xf]
    %v466 = vld [vmem:[%s443 + $0x58] sm:$0xf]
    %v467 = vld [vmem:[%s443 + $0x5c] sm:$0xf]
    %v492 = vunpack.c.l.b16 %v444
    %v493 = vunpack.c.l.b16 %v445
    %v494 = vunpack.c.l.b16 %v446
    %v495 = vunpack.c.l.b16 %v447
    %v496 = vunpack.c.l.b16 %v448
    %v497 = vunpack.c.l.b16 %v449
    %v498 = vunpack.c.l.b16 %v450
    %v499 = vunpack.c.l.b16 %v451
    %v500 = vunpack.c.l.b16 %v452
    %v501 = vunpack.c.l.b16 %v453
    %v502 = vunpack.c.l.b16 %v454
    %v503 = vunpack.c.l.b16 %v455
    %v504 = vunpack.c.l.b16 %v456
    %v505 = vunpack.c.l.b16 %v457
    %v506 = vunpack.c.l.b16 %v458
    %v507 = vunpack.c.l.b16 %v459
    %v508 = vunpack.c.l.b16 %v460
    %v509 = vunpack.c.l.b16 %v461
    %v510 = vunpack.c.l.b16 %v462
    %v511 = vunpack.c.l.b16 %v463
    %v512 = vunpack.c.l.b16 %v464
    %v513 = vunpack.c.l.b16 %v465
    %v514 = vunpack.c.l.b16 %v466
    %v515 = vunpack.c.l.b16 %v467
    %v516 = vpack.c.b16 %v493, %v492
    %v517 = vpack.c.b16 %v495, %v494
    %v518 = vpack.c.b16 %v497, %v496
    %v519 = vpack.c.b16 %v499, %v498
    %v520 = vpack.c.b16 %v501, %v500
    %v521 = vpack.c.b16 %v503, %v502
    %v522 = vpack.c.b16 %v505, %v504
    %v523 = vpack.c.b16 %v507, %v506
    %v524 = vpack.c.b16 %v509, %v508
    %v525 = vpack.c.b16 %v511, %v510
    %v526 = vpack.c.b16 %v513, %v512
    %v527 = vpack.c.b16 %v515, %v514
    %v541 = vsel %vm62, %v442, 0
    %543 = vmatprep.subr.bf16.mxu0 0
    %544 = vmatpush1.bf16.msra.mxu0 %v516
    %545 = vmatprep.subr.bf16.mxu0 0
    %546 = vmatpush1.bf16.msra.mxu0 %v517
    %547 = vmatprep.subr.bf16.mxu0 0
    %548 = vmatpush1.bf16.msra.mxu0 %v518
    %549 = vmatprep.subr.bf16.mxu0 0
    %550 = vmatpush1.bf16.msra.mxu0 %v519
    %551 = vmatprep.subr.bf16.mxu0 0
    %552 = vmatpush1.bf16.msra.mxu0 %v520
    %553 = vmatprep.subr.bf16.mxu0 0
    %554 = vmatpush1.bf16.msra.mxu0 %v521
    %555 = vmatprep.subr.bf16.mxu0 0
    %556 = vmatpush1.bf16.msra.mxu0 %v522
    %557 = vmatprep.subr.bf16.mxu0 0
    %558 = vmatpush1.bf16.msra.mxu0 %v523
    %559 = vmatprep.subr.bf16.mxu0 0
    %560 = vmatpush1.bf16.msra.mxu0 %v524
    %561 = vmatprep.subr.bf16.mxu0 0
    %562 = vmatpush1.bf16.msra.mxu0 %v525
    %563 = vmatprep.subr.bf16.mxu0 0
    %564 = vmatpush1.bf16.msra.mxu0 %v526
    %565 = vmatprep.subr.bf16.mxu0 0
    %566 = vmatpush1.bf16.msra.mxu0 %v527
    %567 = vmatprep.subr.bf16.mxu0 0
    %568 = vmatpush1.bf16.msra.mxu0 0
    %569 = vmatprep.subr.bf16.mxu0 0
    %570 = vmatpush1.bf16.msra.mxu0 0
    %571 = vmatprep.subr.bf16.mxu0 0
    %572 = vmatpush1.bf16.msra.mxu0 0
    %573 = vmatprep.subr.bf16.mxu0 0
    %574 = vmatpush1.bf16.msra.mxu0 0
    %575 = vmatprep.mubr.bf16.mxu0 %v541
    %576 = vmatmul.mubr.bf16.gmra.mrb[0].mxu0 %v441
    %v577 = vpop.f32.mrb[0].mxu0
    %v578 = vadd.f32 0.0, %v577
    %v579 = vpop.f32.mrb[0].mxu0
    %v580 = vpop.f32.mrb[0].mxu0
    %v581 = vadd.f32 0.0, %v580
    %v582 = vpop.f32.mrb[0].mxu0
    %583 = vdwg.mxu0
    %v608 = vunpack.c.l.b16 %v392
    %v609 = vunpack.c.l.b16 %v393
    %v610 = vunpack.c.l.b16 %v394
    %v611 = vunpack.c.l.b16 %v395
    %v612 = vunpack.c.l.b16 %v396
    %v613 = vunpack.c.l.b16 %v397
    %v614 = vunpack.c.l.b16 %v398
    %v615 = vunpack.c.l.b16 %v399
    %v616 = vunpack.c.l.b16 %v400
    %v617 = vunpack.c.l.b16 %v401
    %v618 = vunpack.c.l.b16 %v402
    %v619 = vunpack.c.l.b16 %v403
    %v620 = vunpack.c.l.b16 %v404
    %v621 = vunpack.c.l.b16 %v405
    %v622 = vunpack.c.l.b16 %v406
    %v623 = vunpack.c.l.b16 %v407
    %v624 = vunpack.c.l.b16 %v408
    %v625 = vunpack.c.l.b16 %v409
    %v626 = vunpack.c.l.b16 %v410
    %v627 = vunpack.c.l.b16 %v411
    %v628 = vunpack.c.l.b16 %v412
    %v629 = vunpack.c.l.b16 %v413
    %v630 = vunpack.c.l.b16 %v414
    %v631 = vunpack.c.l.b16 %v415
    %v632 = vpack.c.b16 %v609, %v608
    %v633 = vpack.c.b16 %v611, %v610
    %v634 = vpack.c.b16 %v613, %v612
    %v635 = vpack.c.b16 %v615, %v614
    %v636 = vpack.c.b16 %v617, %v616
    %v637 = vpack.c.b16 %v619, %v618
    %v638 = vpack.c.b16 %v621, %v620
    %v639 = vpack.c.b16 %v623, %v622
    %v640 = vpack.c.b16 %v625, %v624
    %v641 = vpack.c.b16 %v627, %v626
    %v642 = vpack.c.b16 %v629, %v628
    %v643 = vpack.c.b16 %v631, %v630
    %v657 = vsel %vm62, %v391, 0
    %659 = vmatprep.subr.bf16.mxu0 0
    %660 = vmatpush1.bf16.msra.mxu0 %v632
    %661 = vmatprep.subr.bf16.mxu0 0
    %662 = vmatpush1.bf16.msra.mxu0 %v633
    %663 = vmatprep.subr.bf16.mxu0 0
    %664 = vmatpush1.bf16.msra.mxu0 %v634
    %665 = vmatprep.subr.bf16.mxu0 0
    %666 = vmatpush1.bf16.msra.mxu0 %v635
    %667 = vmatprep.subr.bf16.mxu0 0
    %668 = vmatpush1.bf16.msra.mxu0 %v636
    %669 = vmatprep.subr.bf16.mxu0 0
    %670 = vmatpush1.bf16.msra.mxu0 %v637
    %671 = vmatprep.subr.bf16.mxu0 0
    %672 = vmatpush1.bf16.msra.mxu0 %v638
    %673 = vmatprep.subr.bf16.mxu0 0
    %674 = vmatpush1.bf16.msra.mxu0 %v639
    %675 = vmatprep.subr.bf16.mxu0 0
    %676 = vmatpush1.bf16.msra.mxu0 %v640
    %677 = vmatprep.subr.bf16.mxu0 0
    %678 = vmatpush1.bf16.msra.mxu0 %v641
    %679 = vmatprep.subr.bf16.mxu0 0
    %680 = vmatpush1.bf16.msra.mxu0 %v642
    %681 = vmatprep.subr.bf16.mxu0 0
    %682 = vmatpush1.bf16.msra.mxu0 %v643
    %683 = vmatprep.subr.bf16.mxu0 0
    %684 = vmatpush1.bf16.msra.mxu0 0
    %685 = vmatprep.subr.bf16.mxu0 0
    %686 = vmatpush1.bf16.msra.mxu0 0
    %687 = vmatprep.subr.bf16.mxu0 0
    %688 = vmatpush1.bf16.msra.mxu0 0
    %689 = vmatprep.subr.bf16.mxu0 0
    %690 = vmatpush1.bf16.msra.mxu0 0
    %691 = vmatprep.mubr.bf16.mxu0 %v657
    %692 = vmatmul.mubr.bf16.gmra.mrb[0].mxu0 %v390
    %v693 = vpop.f32.mrb[0].mxu0
    %v694 = vadd.f32 %v578, %v693
    %v695 = vpop.f32.mrb[0].mxu0
    %v696 = vpop.f32.mrb[0].mxu0
    %v697 = vadd.f32 %v581, %v696
    %v698 = vpop.f32.mrb[0].mxu0
    %699 = vdwg.mxu0
    %vm700 = vcmask 1045504
    %v701 = vrot.slane %v382, 2
    %v702 = vrot.slane %v386, 2
    %v703 = vsel %vm700, %v701, %v702
    %v704 = vrot.slane %v383, 2
    %v705 = vrot.slane %v387, 2
    %v706 = vsel %vm700, %v704, %v705
    %v707 = vrot.slane %v384, 2
    %v708 = vrot.slane %v388, 2
    %v709 = vsel %vm700, %v707, %v708
    %v710 = vrot.slane %v385, 2
    %v711 = vrot.slane %v389, 2
    %v712 = vsel %vm700, %v710, %v711
    %v717 = vpack.c.bf16 %v709, %v703
    %v718 = vpack.c.bf16 %v712, %v706
    %s719 = scalar_lea.vmem %s5, 192
    %v720 = vld [vmem:[%s719] sm:$0xf]
    %v721 = vld [vmem:[%s719 + $0x4] sm:$0xf]
    %v722 = vld [vmem:[%s719 + $0x8] sm:$0xf]
    %v723 = vld [vmem:[%s719 + $0xc] sm:$0xf]
    %v724 = vld [vmem:[%s719 + $0x10] sm:$0xf]
    %v725 = vld [vmem:[%s719 + $0x14] sm:$0xf]
    %v726 = vld [vmem:[%s719 + $0x18] sm:$0xf]
    %v727 = vld [vmem:[%s719 + $0x1c] sm:$0xf]
    %v728 = vld [vmem:[%s719 + $0x20] sm:$0xf]
    %v729 = vld [vmem:[%s719 + $0x24] sm:$0xf]
    %v730 = vld [vmem:[%s719 + $0x28] sm:$0xf]
    %v731 = vld [vmem:[%s719 + $0x2c] sm:$0xf]
    %v732 = vld [vmem:[%s719 + $0x30] sm:$0xf]
    %v733 = vld [vmem:[%s719 + $0x34] sm:$0xf]
    %v734 = vld [vmem:[%s719 + $0x38] sm:$0xf]
    %v735 = vld [vmem:[%s719 + $0x3c] sm:$0xf]
    %v736 = vld [vmem:[%s719 + $0x40] sm:$0xf]
    %v737 = vld [vmem:[%s719 + $0x44] sm:$0xf]
    %v738 = vld [vmem:[%s719 + $0x48] sm:$0xf]
    %v739 = vld [vmem:[%s719 + $0x4c] sm:$0xf]
    %v740 = vld [vmem:[%s719 + $0x50] sm:$0xf]
    %v741 = vld [vmem:[%s719 + $0x54] sm:$0xf]
    %v742 = vld [vmem:[%s719 + $0x58] sm:$0xf]
    %v743 = vld [vmem:[%s719 + $0x5c] sm:$0xf]
    %v768 = vunpack.c.l.b16 %v720
    %v769 = vunpack.c.l.b16 %v721
    %v770 = vunpack.c.l.b16 %v722
    %v771 = vunpack.c.l.b16 %v723
    %v772 = vunpack.c.l.b16 %v724
    %v773 = vunpack.c.l.b16 %v725
    %v774 = vunpack.c.l.b16 %v726
    %v775 = vunpack.c.l.b16 %v727
    %v776 = vunpack.c.l.b16 %v728
    %v777 = vunpack.c.l.b16 %v729
    %v778 = vunpack.c.l.b16 %v730
    %v779 = vunpack.c.l.b16 %v731
    %v780 = vunpack.c.l.b16 %v732
    %v781 = vunpack.c.l.b16 %v733
    %v782 = vunpack.c.l.b16 %v734
    %v783 = vunpack.c.l.b16 %v735
    %v784 = vunpack.c.l.b16 %v736
    %v785 = vunpack.c.l.b16 %v737
    %v786 = vunpack.c.l.b16 %v738
    %v787 = vunpack.c.l.b16 %v739
    %v788 = vunpack.c.l.b16 %v740
    %v789 = vunpack.c.l.b16 %v741
    %v790 = vunpack.c.l.b16 %v742
    %v791 = vunpack.c.l.b16 %v743
    %v792 = vpack.c.b16 %v769, %v768
    %v793 = vpack.c.b16 %v771, %v770
    %v794 = vpack.c.b16 %v773, %v772
    %v795 = vpack.c.b16 %v775, %v774
    %v796 = vpack.c.b16 %v777, %v776
    %v797 = vpack.c.b16 %v779, %v778
    %v798 = vpack.c.b16 %v781, %v780
    %v799 = vpack.c.b16 %v783, %v782
    %v800 = vpack.c.b16 %v785, %v784
    %v801 = vpack.c.b16 %v787, %v786
    %v802 = vpack.c.b16 %v789, %v788
    %v803 = vpack.c.b16 %v791, %v790
    %v817 = vsel %vm62, %v718, 0
    %819 = vmatprep.subr.bf16.mxu0 0
    %820 = vmatpush1.bf16.msra.mxu0 %v792
    %821 = vmatprep.subr.bf16.mxu0 0
    %822 = vmatpush1.bf16.msra.mxu0 %v793
    %823 = vmatprep.subr.bf16.mxu0 0
    %824 = vmatpush1.bf16.msra.mxu0 %v794
    %825 = vmatprep.subr.bf16.mxu0 0
    %826 = vmatpush1.bf16.msra.mxu0 %v795
    %827 = vmatprep.subr.bf16.mxu0 0
    %828 = vmatpush1.bf16.msra.mxu0 %v796
    %829 = vmatprep.subr.bf16.mxu0 0
    %830 = vmatpush1.bf16.msra.mxu0 %v797
    %831 = vmatprep.subr.bf16.mxu0 0
    %832 = vmatpush1.bf16.msra.mxu0 %v798
    %833 = vmatprep.subr.bf16.mxu0 0
    %834 = vmatpush1.bf16.msra.mxu0 %v799
    %835 = vmatprep.subr.bf16.mxu0 0
    %836 = vmatpush1.bf16.msra.mxu0 %v800
    %837 = vmatprep.subr.bf16.mxu0 0
    %838 = vmatpush1.bf16.msra.mxu0 %v801
    %839 = vmatprep.subr.bf16.mxu0 0
    %840 = vmatpush1.bf16.msra.mxu0 %v802
    %841 = vmatprep.subr.bf16.mxu0 0
    %842 = vmatpush1.bf16.msra.mxu0 %v803
    %843 = vmatprep.subr.bf16.mxu0 0
    %844 = vmatpush1.bf16.msra.mxu0 0
    %845 = vmatprep.subr.bf16.mxu0 0
    %846 = vmatpush1.bf16.msra.mxu0 0
    %847 = vmatprep.subr.bf16.mxu0 0
    %848 = vmatpush1.bf16.msra.mxu0 0
    %849 = vmatprep.subr.bf16.mxu0 0
    %850 = vmatpush1.bf16.msra.mxu0 0
    %851 = vmatprep.mubr.bf16.mxu0 %v817
    %852 = vmatmul.mubr.bf16.gmra.mrb[0].mxu0 %v717
    %v853 = vpop.f32.mrb[0].mxu0
    %v854 = vadd.f32 0.0, %v853
    %v855 = vpop.f32.mrb[0].mxu0
    %v856 = vpop.f32.mrb[0].mxu0
    %v857 = vadd.f32 0.0, %v856
    %v858 = vpop.f32.mrb[0].mxu0
    %859 = vdwg.mxu0
    %v860 = vadd.f32 %v694, %v854
    %v861 = vadd.f32 %v697, %v857
    %v862 = vld [vmem:[%s6] sm:$0x1]
    %v864 = vlaneseq
    %v865 = vshrl.u32 %v864, 7
    %v866 = vsub.s32 0, %v865
    %v867 = vrot.slane %v862, %v866
    %v869 = vadd.f32 %v860, %v867
    %v870 = vadd.f32 %v861, %v867
    %v871 = vmax.f32 %v869, 0.0
    %v872 = vmax.f32 %v870, 0.0
    %v873 = vld [vmem:[%s0] sm:$0xff]
    %v874 = vld [vmem:[%s0 + $0x8] sm:$0xff]
    %v875 = vld [vmem:[%s0 + $0x10] sm:$0xff]
    %v876 = vld [vmem:[%s0 + $0x18] sm:$0xff]
    %v877 = vld [vmem:[%s7] sm:$0xff]
    %v878 = vld [vmem:[%s7 + $0x8] sm:$0xff]
    %v879 = vld [vmem:[%s7 + $0x10] sm:$0xff]
    %v880 = vld [vmem:[%s7 + $0x18] sm:$0xff]
    %v881 = vld [vmem:[%s7 + $0x20] sm:$0xff]
    %v882 = vld [vmem:[%s7 + $0x28] sm:$0xff]
    %v883 = vld [vmem:[%s7 + $0x30] sm:$0xff]
    %v884 = vld [vmem:[%s7 + $0x38] sm:$0xff]
    %v886 = vsel %vm62, %v871, 0
    %888 = vmatprep.subr.mxu0 0.0
    %889 = vmatpush1.msra.mxu0 %v877
    %890 = vmatprep.subr.mxu0 0.0
    %891 = vmatpush1.msra.mxu0 %v878
    %892 = vmatprep.subr.mxu0 0.0
    %893 = vmatpush1.msra.mxu0 %v879
    %894 = vmatprep.subr.mxu0 0.0
    %895 = vmatpush1.msra.mxu0 %v880
    %896 = vmatprep.subr.mxu0 0.0
    %897 = vmatpush1.msra.mxu0 %v881
    %898 = vmatprep.subr.mxu0 0.0
    %899 = vmatpush1.msra.mxu0 %v882
    %900 = vmatprep.subr.mxu0 0.0
    %901 = vmatpush1.msra.mxu0 %v883
    %902 = vmatprep.subr.mxu0 0.0
    %903 = vmatpush1.msra.mxu0 %v884
    %904 = vmatprep.subr.mxu0 0.0
    %905 = vmatpush1.msra.mxu0 0.0
    %906 = vmatprep.subr.mxu0 0.0
    %907 = vmatpush1.msra.mxu0 0.0
    %908 = vmatprep.subr.mxu0 0.0
    %909 = vmatpush1.msra.mxu0 0.0
    %910 = vmatprep.subr.mxu0 0.0
    %911 = vmatpush1.msra.mxu0 0.0
    %912 = vmatprep.subr.mxu0 0.0
    %913 = vmatpush1.msra.mxu0 0.0
    %914 = vmatprep.subr.mxu0 0.0
    %915 = vmatpush1.msra.mxu0 0.0
    %916 = vmatprep.subr.mxu0 0.0
    %917 = vmatpush1.msra.mxu0 0.0
    %918 = vmatprep.subr.mxu0 0.0
    %919 = vmatpush1.msra.mxu0 0.0
    %920 = vmatprep.subr.mxu0 0.0
    %921 = vmatpush1.msra.mxu0 0.0
    %922 = vmatprep.subr.mxu0 0.0
    %923 = vmatpush1.msra.mxu0 0.0
    %924 = vmatprep.subr.mxu0 0.0
    %925 = vmatpush1.msra.mxu0 0.0
    %926 = vmatprep.subr.mxu0 0.0
    %927 = vmatpush1.msra.mxu0 0.0
    %928 = vmatprep.subr.mxu0 0.0
    %929 = vmatpush1.msra.mxu0 0.0
    %930 = vmatprep.subr.mxu0 0.0
    %931 = vmatpush1.msra.mxu0 0.0
    %932 = vmatprep.subr.mxu0 0.0
    %933 = vmatpush1.msra.mxu0 0.0
    %934 = vmatprep.subr.mxu0 0.0
    %935 = vmatpush1.msra.mxu0 0.0
    %936 = vmatprep.subr.mxu0 0.0
    %937 = vmatpush1.msra.mxu0 0.0
    %938 = vmatprep.subr.mxu0 0.0
    %939 = vmatpush1.msra.mxu0 0.0
    %940 = vmatprep.subr.mxu0 0.0
    %941 = vmatpush1.msra.mxu0 0.0
    %942 = vmatprep.subr.mxu0 0.0
    %943 = vmatpush1.msra.mxu0 0.0
    %944 = vmatprep.subr.mxu0 0.0
    %945 = vmatpush1.msra.mxu0 0.0
    %946 = vmatprep.subr.mxu0 0.0
    %947 = vmatpush1.msra.mxu0 0.0
    %948 = vmatprep.subr.mxu0 0.0
    %949 = vmatpush1.msra.mxu0 0.0
    %950 = vmatprep.subr.mxu0 0.0
    %951 = vmatpush1.msra.mxu0 0.0
    %952 = vmatprep.mubr.f32.mxu0 0.0
    %953 = vmatmul.mubr.f32.gmra.mrb[0].mxu0 %v886
    %v954 = vpop.f32.mrb[0].mxu0
    %v955 = vadd.f32 0.0, %v954
    %v956 = vpop.f32.mrb[0].mxu0
    %957 = vdwg.mxu0
    %v958 = vld [vmem:[%s8] sm:$0xff]
    %v959 = vld [vmem:[%s8 + $0x8] sm:$0xff]
    %vm960 = vcmask 64512
    %v962 = vsel %vm960, %v958, 0
    %v965 = vsel %vm960, %v959, 0
    %967 = vmatprep.subr.mxu0 0.0
    %968 = vmatpush1.msra.mxu0 %v955
    %969 = vmatprep.subr.mxu0 0.0
    %970 = vmatpush1.msra.mxu0 0.0
    %971 = vmatprep.subr.mxu0 0.0
    %972 = vmatpush1.msra.mxu0 0.0
    %973 = vmatprep.subr.mxu0 0.0
    %974 = vmatpush1.msra.mxu0 0.0
    %975 = vmatprep.subr.mxu0 0.0
    %976 = vmatpush1.msra.mxu0 0.0
    %977 = vmatprep.subr.mxu0 0.0
    %978 = vmatpush1.msra.mxu0 0.0
    %979 = vmatprep.subr.mxu0 0.0
    %980 = vmatpush1.msra.mxu0 0.0
    %981 = vmatprep.subr.mxu0 0.0
    %982 = vmatpush1.msra.mxu0 0.0
    %983 = vmatprep.subr.mxu0 0.0
    %984 = vmatpush1.msra.mxu0 0.0
    %985 = vmatprep.subr.mxu0 0.0
    %986 = vmatpush1.msra.mxu0 0.0
    %987 = vmatprep.subr.mxu0 0.0
    %988 = vmatpush1.msra.mxu0 0.0
    %989 = vmatprep.subr.mxu0 0.0
    %990 = vmatpush1.msra.mxu0 0.0
    %991 = vmatprep.subr.mxu0 0.0
    %992 = vmatpush1.msra.mxu0 0.0
    %993 = vmatprep.subr.mxu0 0.0
    %994 = vmatpush1.msra.mxu0 0.0
    %995 = vmatprep.subr.mxu0 0.0
    %996 = vmatpush1.msra.mxu0 0.0
    %997 = vmatprep.subr.mxu0 0.0
    %998 = vmatpush1.msra.mxu0 0.0
    %999 = vmatprep.subr.mxu0 0.0
    %1000 = vmatpush1.msra.mxu0 0.0
    %1001 = vmatprep.subr.mxu0 0.0
    %1002 = vmatpush1.msra.mxu0 0.0
    %1003 = vmatprep.subr.mxu0 0.0
    %1004 = vmatpush1.msra.mxu0 0.0
    %1005 = vmatprep.subr.mxu0 0.0
    %1006 = vmatpush1.msra.mxu0 0.0
    %1007 = vmatprep.subr.mxu0 0.0
    %1008 = vmatpush1.msra.mxu0 0.0
    %1009 = vmatprep.subr.mxu0 0.0
    %1010 = vmatpush1.msra.mxu0 0.0
    %1011 = vmatprep.subr.mxu0 0.0
    %1012 = vmatpush1.msra.mxu0 0.0
    %1013 = vmatprep.subr.mxu0 0.0
    %1014 = vmatpush1.msra.mxu0 0.0
    %1015 = vmatprep.subr.mxu0 0.0
    %1016 = vmatpush1.msra.mxu0 0.0
    %1017 = vmatprep.subr.mxu0 0.0
    %1018 = vmatpush1.msra.mxu0 0.0
    %1019 = vmatprep.subr.mxu0 0.0
    %1020 = vmatpush1.msra.mxu0 0.0
    %1021 = vmatprep.subr.mxu0 0.0
    %1022 = vmatpush1.msra.mxu0 0.0
    %1023 = vmatprep.subr.mxu0 0.0
    %1024 = vmatpush1.msra.mxu0 0.0
    %1025 = vmatprep.subr.mxu0 0.0
    %1026 = vmatpush1.msra.mxu0 0.0
    %1027 = vmatprep.subr.mxu0 0.0
    %1028 = vmatpush1.msra.mxu0 0.0
    %1029 = vmatprep.subr.mxu0 0.0
    %1030 = vmatpush1.msra.mxu0 0.0
    %1031 = vmatprep.mubr.f32.mxu0 0.0
    %1032 = vmatmul.mubr.f32.gmra.mrb[0].mxu0 %v962
    %v1033 = vpop.f32.mrb[0].mxu0
    %v1034 = vadd.f32 0.0, %v1033
    %v1035 = vpop.f32.mrb[0].mxu0
    %1036 = vmatprep.mubr.f32.mxu0 0.0
    %1037 = vmatmul.mubr.f32.gmra.mrb[0].mxu0 %v965
    %v1038 = vpop.f32.mrb[0].mxu0
    %v1039 = vadd.f32 0.0, %v1038
    %v1040 = vpop.f32.mrb[0].mxu0
    %1041 = vdwg.mxu0
    %v1043 = vsel %vm62, %v872, 0
    %1045 = vmatprep.subr.mxu0 0.0
    %1046 = vmatpush1.msra.mxu0 %v877
    %1047 = vmatprep.subr.mxu0 0.0
    %1048 = vmatpush1.msra.mxu0 %v878
    %1049 = vmatprep.subr.mxu0 0.0
    %1050 = vmatpush1.msra.mxu0 %v879
    %1051 = vmatprep.subr.mxu0 0.0
    %1052 = vmatpush1.msra.mxu0 %v880
    %1053 = vmatprep.subr.mxu0 0.0
    %1054 = vmatpush1.msra.mxu0 %v881
    %1055 = vmatprep.subr.mxu0 0.0
    %1056 = vmatpush1.msra.mxu0 %v882
    %1057 = vmatprep.subr.mxu0 0.0
    %1058 = vmatpush1.msra.mxu0 %v883
    %1059 = vmatprep.subr.mxu0 0.0
    %1060 = vmatpush1.msra.mxu0 %v884
    %1061 = vmatprep.subr.mxu0 0.0
    %1062 = vmatpush1.msra.mxu0 0.0
    %1063 = vmatprep.subr.mxu0 0.0
    %1064 = vmatpush1.msra.mxu0 0.0
    %1065 = vmatprep.subr.mxu0 0.0
    %1066 = vmatpush1.msra.mxu0 0.0
    %1067 = vmatprep.subr.mxu0 0.0
    %1068 = vmatpush1.msra.mxu0 0.0
    %1069 = vmatprep.subr.mxu0 0.0
    %1070 = vmatpush1.msra.mxu0 0.0
    %1071 = vmatprep.subr.mxu0 0.0
    %1072 = vmatpush1.msra.mxu0 0.0
    %1073 = vmatprep.subr.mxu0 0.0
    %1074 = vmatpush1.msra.mxu0 0.0
    %1075 = vmatprep.subr.mxu0 0.0
    %1076 = vmatpush1.msra.mxu0 0.0
    %1077 = vmatprep.subr.mxu0 0.0
    %1078 = vmatpush1.msra.mxu0 0.0
    %1079 = vmatprep.subr.mxu0 0.0
    %1080 = vmatpush1.msra.mxu0 0.0
    %1081 = vmatprep.subr.mxu0 0.0
    %1082 = vmatpush1.msra.mxu0 0.0
    %1083 = vmatprep.subr.mxu0 0.0
    %1084 = vmatpush1.msra.mxu0 0.0
    %1085 = vmatprep.subr.mxu0 0.0
    %1086 = vmatpush1.msra.mxu0 0.0
    %1087 = vmatprep.subr.mxu0 0.0
    %1088 = vmatpush1.msra.mxu0 0.0
    %1089 = vmatprep.subr.mxu0 0.0
    %1090 = vmatpush1.msra.mxu0 0.0
    %1091 = vmatprep.subr.mxu0 0.0
    %1092 = vmatpush1.msra.mxu0 0.0
    %1093 = vmatprep.subr.mxu0 0.0
    %1094 = vmatpush1.msra.mxu0 0.0
    %1095 = vmatprep.subr.mxu0 0.0
    %1096 = vmatpush1.msra.mxu0 0.0
    %1097 = vmatprep.subr.mxu0 0.0
    %1098 = vmatpush1.msra.mxu0 0.0
    %1099 = vmatprep.subr.mxu0 0.0
    %1100 = vmatpush1.msra.mxu0 0.0
    %1101 = vmatprep.subr.mxu0 0.0
    %1102 = vmatpush1.msra.mxu0 0.0
    %1103 = vmatprep.subr.mxu0 0.0
    %1104 = vmatpush1.msra.mxu0 0.0
    %1105 = vmatprep.subr.mxu0 0.0
    %1106 = vmatpush1.msra.mxu0 0.0
    %1107 = vmatprep.subr.mxu0 0.0
    %1108 = vmatpush1.msra.mxu0 0.0
    %1109 = vmatprep.mubr.f32.mxu0 0.0
    %1110 = vmatmul.mubr.f32.gmra.mrb[0].mxu0 %v1043
    %v1111 = vpop.f32.mrb[0].mxu0
    %v1112 = vadd.f32 0.0, %v1111
    %v1113 = vpop.f32.mrb[0].mxu0
    %1114 = vdwg.mxu0
    %1115 = vmatprep.subr.mxu0 0.0
    %1116 = vmatpush1.msra.mxu0 %v1112
    %1117 = vmatprep.subr.mxu0 0.0
    %1118 = vmatpush1.msra.mxu0 0.0
    %1119 = vmatprep.subr.mxu0 0.0
    %1120 = vmatpush1.msra.mxu0 0.0
    %1121 = vmatprep.subr.mxu0 0.0
    %1122 = vmatpush1.msra.mxu0 0.0
    %1123 = vmatprep.subr.mxu0 0.0
    %1124 = vmatpush1.msra.mxu0 0.0
    %1125 = vmatprep.subr.mxu0 0.0
    %1126 = vmatpush1.msra.mxu0 0.0
    %1127 = vmatprep.subr.mxu0 0.0
    %1128 = vmatpush1.msra.mxu0 0.0
    %1129 = vmatprep.subr.mxu0 0.0
    %1130 = vmatpush1.msra.mxu0 0.0
    %1131 = vmatprep.subr.mxu0 0.0
    %1132 = vmatpush1.msra.mxu0 0.0
    %1133 = vmatprep.subr.mxu0 0.0
    %1134 = vmatpush1.msra.mxu0 0.0
    %1135 = vmatprep.subr.mxu0 0.0
    %1136 = vmatpush1.msra.mxu0 0.0
    %1137 = vmatprep.subr.mxu0 0.0
    %1138 = vmatpush1.msra.mxu0 0.0
    %1139 = vmatprep.subr.mxu0 0.0
    %1140 = vmatpush1.msra.mxu0 0.0
    %1141 = vmatprep.subr.mxu0 0.0
    %1142 = vmatpush1.msra.mxu0 0.0
    %1143 = vmatprep.subr.mxu0 0.0
    %1144 = vmatpush1.msra.mxu0 0.0
    %1145 = vmatprep.subr.mxu0 0.0
    %1146 = vmatpush1.msra.mxu0 0.0
    %1147 = vmatprep.subr.mxu0 0.0
    %1148 = vmatpush1.msra.mxu0 0.0
    %1149 = vmatprep.subr.mxu0 0.0
    %1150 = vmatpush1.msra.mxu0 0.0
    %1151 = vmatprep.subr.mxu0 0.0
    %1152 = vmatpush1.msra.mxu0 0.0
    %1153 = vmatprep.subr.mxu0 0.0
    %1154 = vmatpush1.msra.mxu0 0.0
    %1155 = vmatprep.subr.mxu0 0.0
    %1156 = vmatpush1.msra.mxu0 0.0
    %1157 = vmatprep.subr.mxu0 0.0
    %1158 = vmatpush1.msra.mxu0 0.0
    %1159 = vmatprep.subr.mxu0 0.0
    %1160 = vmatpush1.msra.mxu0 0.0
    %1161 = vmatprep.subr.mxu0 0.0
    %1162 = vmatpush1.msra.mxu0 0.0
    %1163 = vmatprep.subr.mxu0 0.0
    %1164 = vmatpush1.msra.mxu0 0.0
    %1165 = vmatprep.subr.mxu0 0.0
    %1166 = vmatpush1.msra.mxu0 0.0
    %1167 = vmatprep.subr.mxu0 0.0
    %1168 = vmatpush1.msra.mxu0 0.0
    %1169 = vmatprep.subr.mxu0 0.0
    %1170 = vmatpush1.msra.mxu0 0.0
    %1171 = vmatprep.subr.mxu0 0.0
    %1172 = vmatpush1.msra.mxu0 0.0
    %1173 = vmatprep.subr.mxu0 0.0
    %1174 = vmatpush1.msra.mxu0 0.0
    %1175 = vmatprep.subr.mxu0 0.0
    %1176 = vmatpush1.msra.mxu0 0.0
    %1177 = vmatprep.subr.mxu0 0.0
    %1178 = vmatpush1.msra.mxu0 0.0
    %1179 = vmatprep.mubr.f32.mxu0 0.0
    %1180 = vmatmul.mubr.f32.gmra.mrb[0].mxu0 %v962
    %v1181 = vpop.f32.mrb[0].mxu0
    %v1182 = vadd.f32 0.0, %v1181
    %v1183 = vpop.f32.mrb[0].mxu0
    %1184 = vmatprep.mubr.f32.mxu0 0.0
    %1185 = vmatmul.mubr.f32.gmra.mrb[0].mxu0 %v965
    %v1186 = vpop.f32.mrb[0].mxu0
    %v1187 = vadd.f32 0.0, %v1186
    %v1188 = vpop.f32.mrb[0].mxu0
    %1189 = vdwg.mxu0
    %1194 = vrot.lane.b32.xlu0 %v1034, 64
    %v1195 = vpop.permute.xlu0 %1194
    %1196 = vrot.lane.b32.xlu0 %v1039, 64
    %v1197 = vpop.permute.xlu0 %1196
    %1198 = vrot.lane.b32.xlu0 %v1182, 64
    %v1199 = vpop.permute.xlu0 %1198
    %1200 = vrot.lane.b32.xlu0 %v1187, 64
    %v1201 = vpop.permute.xlu0 %1200
    %v1206 = vsel %vm62, %v873, %v1195
    %v1207 = vsel %vm62, %v874, %v1197
    %v1208 = vsel %vm62, %v875, %v1199
    %v1209 = vsel %vm62, %v876, %v1201
    %v1214 = vrot.slane %v1206, 7
    %v1215 = vrot.slane %v1195, 7
    %v1216 = vrot.slane %v1207, 7
    %v1217 = vsel %vm381, %v1214, %v1216
    %v1218 = vrot.slane %v1197, 7
    %v1219 = vsel %vm381, %v1215, %v1218
    %v1220 = vrot.slane %v1208, 7
    %v1221 = vrot.slane %v1199, 7
    %v1222 = vrot.slane %v1209, 7
    %v1223 = vsel %vm381, %v1220, %v1222
    %v1224 = vrot.slane %v1201, 7
    %v1225 = vsel %vm381, %v1221, %v1224
    %v1238 = vsel %vm381, 0.0, %v1214
    %v1239 = vsel %vm381, 0.0, %v1215
    %v1240 = vsel %vm381, 0.0, %v1220
    %v1241 = vsel %vm381, 0.0, %v1221
    %v1242 = vsel %vm381, %v1216, 0.0
    %v1243 = vsel %vm381, %v1218, 0.0
    %v1244 = vsel %vm381, %v1222, 0.0
    %v1245 = vsel %vm381, %v1224, 0.0
    %v1246 = vpack.c.bf16 %v1217, %v1238
    %v1247 = vpack.c.bf16 %v1219, %v1239
    %v1248 = vpack.c.bf16 %v1223, %v1240
    %v1249 = vpack.c.bf16 %v1225, %v1241
    %v1250 = vld [vmem:[%s9] sm:$0xf]
    %v1251 = vld [vmem:[%s9 + $0x4] sm:$0xf]
    %v1252 = vld [vmem:[%s9 + $0x8] sm:$0xf]
    %v1253 = vld [vmem:[%s9 + $0xc] sm:$0xf]
    %v1254 = vld [vmem:[%s9 + $0x10] sm:$0xf]
    %v1255 = vld [vmem:[%s9 + $0x14] sm:$0xf]
    %v1256 = vld [vmem:[%s9 + $0x18] sm:$0xf]
    %v1257 = vld [vmem:[%s9 + $0x1c] sm:$0xf]
    %v1258 = vld [vmem:[%s9 + $0x20] sm:$0xf]
    %v1259 = vld [vmem:[%s9 + $0x24] sm:$0xf]
    %v1260 = vld [vmem:[%s9 + $0x28] sm:$0xf]
    %v1261 = vld [vmem:[%s9 + $0x2c] sm:$0xf]
    %v1262 = vld [vmem:[%s9 + $0x30] sm:$0xf]
    %v1263 = vld [vmem:[%s9 + $0x34] sm:$0xf]
    %v1264 = vld [vmem:[%s9 + $0x38] sm:$0xf]
    %v1265 = vld [vmem:[%s9 + $0x3c] sm:$0xf]
    %v1266 = vld [vmem:[%s9 + $0x40] sm:$0xf]
    %v1267 = vld [vmem:[%s9 + $0x44] sm:$0xf]
    %v1268 = vld [vmem:[%s9 + $0x48] sm:$0xf]
    %v1269 = vld [vmem:[%s9 + $0x4c] sm:$0xf]
    %v1270 = vld [vmem:[%s9 + $0x50] sm:$0xf]
    %v1271 = vld [vmem:[%s9 + $0x54] sm:$0xf]
    %v1272 = vld [vmem:[%s9 + $0x58] sm:$0xf]
    %v1273 = vld [vmem:[%s9 + $0x5c] sm:$0xf]
    %v1282 = vrot.slane %v1238, 1
    %v1283 = vrot.slane %v1217, 1
    %v1284 = vsel %vm424, %v1282, %v1283
    %v1285 = vrot.slane %v1239, 1
    %v1286 = vrot.slane %v1219, 1
    %v1287 = vsel %vm424, %v1285, %v1286
    %v1288 = vrot.slane %v1242, 1
    %v1289 = vsel %vm424, %v1283, %v1288
    %v1290 = vrot.slane %v1243, 1
    %v1291 = vsel %vm424, %v1286, %v1290
    %v1292 = vrot.slane %v1240, 1
    %v1293 = vrot.slane %v1223, 1
    %v1294 = vsel %vm424, %v1292, %v1293
    %v1295 = vrot.slane %v1241, 1
    %v1296 = vrot.slane %v1225, 1
    %v1297 = vsel %vm424, %v1295, %v1296
    %v1298 = vrot.slane %v1244, 1
    %v1299 = vsel %vm424, %v1293, %v1298
    %v1300 = vrot.slane %v1245, 1
    %v1301 = vsel %vm424, %v1296, %v1300
    %v1310 = vpack.c.bf16 %v1289, %v1284
    %v1311 = vpack.c.bf16 %v1291, %v1287
    %v1312 = vpack.c.bf16 %v1299, %v1294
    %v1313 = vpack.c.bf16 %v1301, %v1297
    %s1314 = scalar_lea.vmem %s9, 96
    %v1315 = vld [vmem:[%s1314] sm:$0xf]
    %v1316 = vld [vmem:[%s1314 + $0x4] sm:$0xf]
    %v1317 = vld [vmem:[%s1314 + $0x8] sm:$0xf]
    %v1318 = vld [vmem:[%s1314 + $0xc] sm:$0xf]
    %v1319 = vld [vmem:[%s1314 + $0x10] sm:$0xf]
    %v1320 = vld [vmem:[%s1314 + $0x14] sm:$0xf]
    %v1321 = vld [vmem:[%s1314 + $0x18] sm:$0xf]
    %v1322 = vld [vmem:[%s1314 + $0x1c] sm:$0xf]
    %v1323 = vld [vmem:[%s1314 + $0x20] sm:$0xf]
    %v1324 = vld [vmem:[%s1314 + $0x24] sm:$0xf]
    %v1325 = vld [vmem:[%s1314 + $0x28] sm:$0xf]
    %v1326 = vld [vmem:[%s1314 + $0x2c] sm:$0xf]
    %v1327 = vld [vmem:[%s1314 + $0x30] sm:$0xf]
    %v1328 = vld [vmem:[%s1314 + $0x34] sm:$0xf]
    %v1329 = vld [vmem:[%s1314 + $0x38] sm:$0xf]
    %v1330 = vld [vmem:[%s1314 + $0x3c] sm:$0xf]
    %v1331 = vld [vmem:[%s1314 + $0x40] sm:$0xf]
    %v1332 = vld [vmem:[%s1314 + $0x44] sm:$0xf]
    %v1333 = vld [vmem:[%s1314 + $0x48] sm:$0xf]
    %v1334 = vld [vmem:[%s1314 + $0x4c] sm:$0xf]
    %v1335 = vld [vmem:[%s1314 + $0x50] sm:$0xf]
    %v1336 = vld [vmem:[%s1314 + $0x54] sm:$0xf]
    %v1337 = vld [vmem:[%s1314 + $0x58] sm:$0xf]
    %v1338 = vld [vmem:[%s1314 + $0x5c] sm:$0xf]
    %v1363 = vunpack.c.l.b16 %v1315
    %v1364 = vunpack.c.l.b16 %v1316
    %v1365 = vunpack.c.l.b16 %v1317
    %v1366 = vunpack.c.l.b16 %v1318
    %v1367 = vunpack.c.l.b16 %v1319
    %v1368 = vunpack.c.l.b16 %v1320
    %v1369 = vunpack.c.l.b16 %v1321
    %v1370 = vunpack.c.l.b16 %v1322
    %v1371 = vunpack.c.l.b16 %v1323
    %v1372 = vunpack.c.l.b16 %v1324
    %v1373 = vunpack.c.l.b16 %v1325
    %v1374 = vunpack.c.l.b16 %v1326
    %v1375 = vunpack.c.l.b16 %v1327
    %v1376 = vunpack.c.l.b16 %v1328
    %v1377 = vunpack.c.l.b16 %v1329
    %v1378 = vunpack.c.l.b16 %v1330
    %v1379 = vunpack.c.l.b16 %v1331
    %v1380 = vunpack.c.l.b16 %v1332
    %v1381 = vunpack.c.l.b16 %v1333
    %v1382 = vunpack.c.l.b16 %v1334
    %v1383 = vunpack.c.l.b16 %v1335
    %v1384 = vunpack.c.l.b16 %v1336
    %v1385 = vunpack.c.l.b16 %v1337
    %v1386 = vunpack.c.l.b16 %v1338
    %v1387 = vpack.c.b16 %v1364, %v1363
    %v1388 = vpack.c.b16 %v1366, %v1365
    %v1389 = vpack.c.b16 %v1368, %v1367
    %v1390 = vpack.c.b16 %v1370, %v1369
    %v1391 = vpack.c.b16 %v1372, %v1371
    %v1392 = vpack.c.b16 %v1374, %v1373
    %v1393 = vpack.c.b16 %v1376, %v1375
    %v1394 = vpack.c.b16 %v1378, %v1377
    %v1395 = vpack.c.b16 %v1380, %v1379
    %v1396 = vpack.c.b16 %v1382, %v1381
    %v1397 = vpack.c.b16 %v1384, %v1383
    %v1398 = vpack.c.b16 %v1386, %v1385
    %v1412 = vsel %vm62, %v1311, 0
    %v1415 = vsel %vm62, %v1313, 0
    %1417 = vmatprep.subr.bf16.mxu0 0
    %1418 = vmatpush1.bf16.msra.mxu0 %v1387
    %1419 = vmatprep.subr.bf16.mxu0 0
    %1420 = vmatpush1.bf16.msra.mxu0 %v1388
    %1421 = vmatprep.subr.bf16.mxu0 0
    %1422 = vmatpush1.bf16.msra.mxu0 %v1389
    %1423 = vmatprep.subr.bf16.mxu0 0
    %1424 = vmatpush1.bf16.msra.mxu0 %v1390
    %1425 = vmatprep.subr.bf16.mxu0 0
    %1426 = vmatpush1.bf16.msra.mxu0 %v1391
    %1427 = vmatprep.subr.bf16.mxu0 0
    %1428 = vmatpush1.bf16.msra.mxu0 %v1392
    %1429 = vmatprep.subr.bf16.mxu0 0
    %1430 = vmatpush1.bf16.msra.mxu0 %v1393
    %1431 = vmatprep.subr.bf16.mxu0 0
    %1432 = vmatpush1.bf16.msra.mxu0 %v1394
    %1433 = vmatprep.subr.bf16.mxu0 0
    %1434 = vmatpush1.bf16.msra.mxu0 %v1395
    %1435 = vmatprep.subr.bf16.mxu0 0
    %1436 = vmatpush1.bf16.msra.mxu0 %v1396
    %1437 = vmatprep.subr.bf16.mxu0 0
    %1438 = vmatpush1.bf16.msra.mxu0 %v1397
    %1439 = vmatprep.subr.bf16.mxu0 0
    %1440 = vmatpush1.bf16.msra.mxu0 %v1398
    %1441 = vmatprep.subr.bf16.mxu0 0
    %1442 = vmatpush1.bf16.msra.mxu0 0
    %1443 = vmatprep.subr.bf16.mxu0 0
    %1444 = vmatpush1.bf16.msra.mxu0 0
    %1445 = vmatprep.subr.bf16.mxu0 0
    %1446 = vmatpush1.bf16.msra.mxu0 0
    %1447 = vmatprep.subr.bf16.mxu0 0
    %1448 = vmatpush1.bf16.msra.mxu0 0
    %1449 = vmatprep.mubr.bf16.mxu0 %v1412
    %1450 = vmatmul.mubr.bf16.gmra.mrb[0].mxu0 %v1310
    %v1451 = vpop.f32.mrb[0].mxu0
    %v1452 = vadd.f32 0.0, %v1451
    %v1453 = vpop.f32.mrb[0].mxu0
    %v1454 = vpop.f32.mrb[0].mxu0
    %v1455 = vadd.f32 0.0, %v1454
    %v1456 = vpop.f32.mrb[0].mxu0
    %1457 = vmatprep.mubr.bf16.mxu0 %v1415
    %1458 = vmatmul.mubr.bf16.gmra.mrb[0].mxu0 %v1312
    %v1459 = vpop.f32.mrb[0].mxu0
    %v1460 = vadd.f32 0.0, %v1459
    %v1461 = vpop.f32.mrb[0].mxu0
    %v1462 = vpop.f32.mrb[0].mxu0
    %v1463 = vadd.f32 0.0, %v1462
    %v1464 = vpop.f32.mrb[0].mxu0
    %1465 = vdwg.mxu0
    %v1490 = vunpack.c.l.b16 %v1250
    %v1491 = vunpack.c.l.b16 %v1251
    %v1492 = vunpack.c.l.b16 %v1252
    %v1493 = vunpack.c.l.b16 %v1253
    %v1494 = vunpack.c.l.b16 %v1254
    %v1495 = vunpack.c.l.b16 %v1255
    %v1496 = vunpack.c.l.b16 %v1256
    %v1497 = vunpack.c.l.b16 %v1257
    %v1498 = vunpack.c.l.b16 %v1258
    %v1499 = vunpack.c.l.b16 %v1259
    %v1500 = vunpack.c.l.b16 %v1260
    %v1501 = vunpack.c.l.b16 %v1261
    %v1502 = vunpack.c.l.b16 %v1262
    %v1503 = vunpack.c.l.b16 %v1263
    %v1504 = vunpack.c.l.b16 %v1264
    %v1505 = vunpack.c.l.b16 %v1265
    %v1506 = vunpack.c.l.b16 %v1266
    %v1507 = vunpack.c.l.b16 %v1267
    %v1508 = vunpack.c.l.b16 %v1268
    %v1509 = vunpack.c.l.b16 %v1269
    %v1510 = vunpack.c.l.b16 %v1270
    %v1511 = vunpack.c.l.b16 %v1271
    %v1512 = vunpack.c.l.b16 %v1272
    %v1513 = vunpack.c.l.b16 %v1273
    %v1514 = vpack.c.b16 %v1491, %v1490
    %v1515 = vpack.c.b16 %v1493, %v1492
    %v1516 = vpack.c.b16 %v1495, %v1494
    %v1517 = vpack.c.b16 %v1497, %v1496
    %v1518 = vpack.c.b16 %v1499, %v1498
    %v1519 = vpack.c.b16 %v1501, %v1500
    %v1520 = vpack.c.b16 %v1503, %v1502
    %v1521 = vpack.c.b16 %v1505, %v1504
    %v1522 = vpack.c.b16 %v1507, %v1506
    %v1523 = vpack.c.b16 %v1509, %v1508
    %v1524 = vpack.c.b16 %v1511, %v1510
    %v1525 = vpack.c.b16 %v1513, %v1512
    %v1539 = vsel %vm62, %v1247, 0
    %v1542 = vsel %vm62, %v1249, 0
    %1544 = vmatprep.subr.bf16.mxu0 0
    %1545 = vmatpush1.bf16.msra.mxu0 %v1514
    %1546 = vmatprep.subr.bf16.mxu0 0
    %1547 = vmatpush1.bf16.msra.mxu0 %v1515
    %1548 = vmatprep.subr.bf16.mxu0 0
    %1549 = vmatpush1.bf16.msra.mxu0 %v1516
    %1550 = vmatprep.subr.bf16.mxu0 0
    %1551 = vmatpush1.bf16.msra.mxu0 %v1517
    %1552 = vmatprep.subr.bf16.mxu0 0
    %1553 = vmatpush1.bf16.msra.mxu0 %v1518
    %1554 = vmatprep.subr.bf16.mxu0 0
    %1555 = vmatpush1.bf16.msra.mxu0 %v1519
    %1556 = vmatprep.subr.bf16.mxu0 0
    %1557 = vmatpush1.bf16.msra.mxu0 %v1520
    %1558 = vmatprep.subr.bf16.mxu0 0
    %1559 = vmatpush1.bf16.msra.mxu0 %v1521
    %1560 = vmatprep.subr.bf16.mxu0 0
    %1561 = vmatpush1.bf16.msra.mxu0 %v1522
    %1562 = vmatprep.subr.bf16.mxu0 0
    %1563 = vmatpush1.bf16.msra.mxu0 %v1523
    %1564 = vmatprep.subr.bf16.mxu0 0
    %1565 = vmatpush1.bf16.msra.mxu0 %v1524
    %1566 = vmatprep.subr.bf16.mxu0 0
    %1567 = vmatpush1.bf16.msra.mxu0 %v1525
    %1568 = vmatprep.subr.bf16.mxu0 0
    %1569 = vmatpush1.bf16.msra.mxu0 0
    %1570 = vmatprep.subr.bf16.mxu0 0
    %1571 = vmatpush1.bf16.msra.mxu0 0
    %1572 = vmatprep.subr.bf16.mxu0 0
    %1573 = vmatpush1.bf16.msra.mxu0 0
    %1574 = vmatprep.subr.bf16.mxu0 0
    %1575 = vmatpush1.bf16.msra.mxu0 0
    %1576 = vmatprep.mubr.bf16.mxu0 %v1539
    %1577 = vmatmul.mubr.bf16.gmra.mrb[0].mxu0 %v1246
    %v1578 = vpop.f32.mrb[0].mxu0
    %v1579 = vadd.f32 %v1452, %v1578
    %v1580 = vpop.f32.mrb[0].mxu0
    %v1581 = vpop.f32.mrb[0].mxu0
    %v1582 = vadd.f32 %v1455, %v1581
    %v1583 = vpop.f32.mrb[0].mxu0
    %1584 = vmatprep.mubr.bf16.mxu0 %v1542
    %1585 = vmatmul.mubr.bf16.gmra.mrb[0].mxu0 %v1248
    %v1586 = vpop.f32.mrb[0].mxu0
    %v1587 = vadd.f32 %v1460, %v1586
    %v1588 = vpop.f32.mrb[0].mxu0
    %v1589 = vpop.f32.mrb[0].mxu0
    %v1590 = vadd.f32 %v1463, %v1589
    %v1591 = vpop.f32.mrb[0].mxu0
    %1592 = vdwg.mxu0
    %v1593 = vrot.slane %v1238, 2
    %v1594 = vrot.slane %v1217, 2
    %v1595 = vsel %vm700, %v1593, %v1594
    %v1596 = vrot.slane %v1239, 2
    %v1597 = vrot.slane %v1219, 2
    %v1598 = vsel %vm700, %v1596, %v1597
    %v1599 = vrot.slane %v1242, 2
    %v1600 = vsel %vm700, %v1594, %v1599
    %v1601 = vrot.slane %v1243, 2
    %v1602 = vsel %vm700, %v1597, %v1601
    %v1603 = vrot.slane %v1240, 2
    %v1604 = vrot.slane %v1223, 2
    %v1605 = vsel %vm700, %v1603, %v1604
    %v1606 = vrot.slane %v1241, 2
    %v1607 = vrot.slane %v1225, 2
    %v1608 = vsel %vm700, %v1606, %v1607
    %v1609 = vrot.slane %v1244, 2
    %v1610 = vsel %vm700, %v1604, %v1609
    %v1611 = vrot.slane %v1245, 2
    %v1612 = vsel %vm700, %v1607, %v1611
    %v1621 = vpack.c.bf16 %v1600, %v1595
    %v1622 = vpack.c.bf16 %v1602, %v1598
    %v1623 = vpack.c.bf16 %v1610, %v1605
    %v1624 = vpack.c.bf16 %v1612, %v1608
    %s1625 = scalar_lea.vmem %s9, 192
    %v1626 = vld [vmem:[%s1625] sm:$0xf]
    %v1627 = vld [vmem:[%s1625 + $0x4] sm:$0xf]
    %v1628 = vld [vmem:[%s1625 + $0x8] sm:$0xf]
    %v1629 = vld [vmem:[%s1625 + $0xc] sm:$0xf]
    %v1630 = vld [vmem:[%s1625 + $0x10] sm:$0xf]
    %v1631 = vld [vmem:[%s1625 + $0x14] sm:$0xf]
    %v1632 = vld [vmem:[%s1625 + $0x18] sm:$0xf]
    %v1633 = vld [vmem:[%s1625 + $0x1c] sm:$0xf]
    %v1634 = vld [vmem:[%s1625 + $0x20] sm:$0xf]
    %v1635 = vld [vmem:[%s1625 + $0x24] sm:$0xf]
    %v1636 = vld [vmem:[%s1625 + $0x28] sm:$0xf]
    %v1637 = vld [vmem:[%s1625 + $0x2c] sm:$0xf]
    %v1638 = vld [vmem:[%s1625 + $0x30] sm:$0xf]
    %v1639 = vld [vmem:[%s1625 + $0x34] sm:$0xf]
    %v1640 = vld [vmem:[%s1625 + $0x38] sm:$0xf]
    %v1641 = vld [vmem:[%s1625 + $0x3c] sm:$0xf]
    %v1642 = vld [vmem:[%s1625 + $0x40] sm:$0xf]
    %v1643 = vld [vmem:[%s1625 + $0x44] sm:$0xf]
    %v1644 = vld [vmem:[%s1625 + $0x48] sm:$0xf]
    %v1645 = vld [vmem:[%s1625 + $0x4c] sm:$0xf]
    %v1646 = vld [vmem:[%s1625 + $0x50] sm:$0xf]
    %v1647 = vld [vmem:[%s1625 + $0x54] sm:$0xf]
    %v1648 = vld [vmem:[%s1625 + $0x58] sm:$0xf]
    %v1649 = vld [vmem:[%s1625 + $0x5c] sm:$0xf]
    %v1674 = vunpack.c.l.b16 %v1626
    %v1675 = vunpack.c.l.b16 %v1627
    %v1676 = vunpack.c.l.b16 %v1628
    %v1677 = vunpack.c.l.b16 %v1629
    %v1678 = vunpack.c.l.b16 %v1630
    %v1679 = vunpack.c.l.b16 %v1631
    %v1680 = vunpack.c.l.b16 %v1632
    %v1681 = vunpack.c.l.b16 %v1633
    %v1682 = vunpack.c.l.b16 %v1634
    %v1683 = vunpack.c.l.b16 %v1635
    %v1684 = vunpack.c.l.b16 %v1636
    %v1685 = vunpack.c.l.b16 %v1637
    %v1686 = vunpack.c.l.b16 %v1638
    %v1687 = vunpack.c.l.b16 %v1639
    %v1688 = vunpack.c.l.b16 %v1640
    %v1689 = vunpack.c.l.b16 %v1641
    %v1690 = vunpack.c.l.b16 %v1642
    %v1691 = vunpack.c.l.b16 %v1643
    %v1692 = vunpack.c.l.b16 %v1644
    %v1693 = vunpack.c.l.b16 %v1645
    %v1694 = vunpack.c.l.b16 %v1646
    %v1695 = vunpack.c.l.b16 %v1647
    %v1696 = vunpack.c.l.b16 %v1648
    %v1697 = vunpack.c.l.b16 %v1649
    %v1698 = vpack.c.b16 %v1675, %v1674
    %v1699 = vpack.c.b16 %v1677, %v1676
    %v1700 = vpack.c.b16 %v1679, %v1678
    %v1701 = vpack.c.b16 %v1681, %v1680
    %v1702 = vpack.c.b16 %v1683, %v1682
    %v1703 = vpack.c.b16 %v1685, %v1684
    %v1704 = vpack.c.b16 %v1687, %v1686
    %v1705 = vpack.c.b16 %v1689, %v1688
    %v1706 = vpack.c.b16 %v1691, %v1690
    %v1707 = vpack.c.b16 %v1693, %v1692
    %v1708 = vpack.c.b16 %v1695, %v1694
    %v1709 = vpack.c.b16 %v1697, %v1696
    %v1723 = vsel %vm62, %v1622, 0
    %v1726 = vsel %vm62, %v1624, 0
    %1728 = vmatprep.subr.bf16.mxu0 0
    %1729 = vmatpush1.bf16.msra.mxu0 %v1698
    %1730 = vmatprep.subr.bf16.mxu0 0
    %1731 = vmatpush1.bf16.msra.mxu0 %v1699
    %1732 = vmatprep.subr.bf16.mxu0 0
    %1733 = vmatpush1.bf16.msra.mxu0 %v1700
    %1734 = vmatprep.subr.bf16.mxu0 0
    %1735 = vmatpush1.bf16.msra.mxu0 %v1701
    %1736 = vmatprep.subr.bf16.mxu0 0
    %1737 = vmatpush1.bf16.msra.mxu0 %v1702
    %1738 = vmatprep.subr.bf16.mxu0 0
    %1739 = vmatpush1.bf16.msra.mxu0 %v1703
    %1740 = vmatprep.subr.bf16.mxu0 0
    %1741 = vmatpush1.bf16.msra.mxu0 %v1704
    %1742 = vmatprep.subr.bf16.mxu0 0
    %1743 = vmatpush1.bf16.msra.mxu0 %v1705
    %1744 = vmatprep.subr.bf16.mxu0 0
    %1745 = vmatpush1.bf16.msra.mxu0 %v1706
    %1746 = vmatprep.subr.bf16.mxu0 0
    %1747 = vmatpush1.bf16.msra.mxu0 %v1707
    %1748 = vmatprep.subr.bf16.mxu0 0
    %1749 = vmatpush1.bf16.msra.mxu0 %v1708
    %1750 = vmatprep.subr.bf16.mxu0 0
    %1751 = vmatpush1.bf16.msra.mxu0 %v1709
    %1752 = vmatprep.subr.bf16.mxu0 0
    %1753 = vmatpush1.bf16.msra.mxu0 0
    %1754 = vmatprep.subr.bf16.mxu0 0
    %1755 = vmatpush1.bf16.msra.mxu0 0
    %1756 = vmatprep.subr.bf16.mxu0 0
    %1757 = vmatpush1.bf16.msra.mxu0 0
    %1758 = vmatprep.subr.bf16.mxu0 0
    %1759 = vmatpush1.bf16.msra.mxu0 0
    %1760 = vmatprep.mubr.bf16.mxu0 %v1723
    %1761 = vmatmul.mubr.bf16.gmra.mrb[0].mxu0 %v1621
    %v1762 = vpop.f32.mrb[0].mxu0
    %v1763 = vadd.f32 0.0, %v1762
    %v1764 = vpop.f32.mrb[0].mxu0
    %v1765 = vpop.f32.mrb[0].mxu0
    %v1766 = vadd.f32 0.0, %v1765
    %v1767 = vpop.f32.mrb[0].mxu0
    %1768 = vmatprep.mubr.bf16.mxu0 %v1726
    %1769 = vmatmul.mubr.bf16.gmra.mrb[0].mxu0 %v1623
    %v1770 = vpop.f32.mrb[0].mxu0
    %v1771 = vadd.f32 0.0, %v1770
    %v1772 = vpop.f32.mrb[0].mxu0
    %v1773 = vpop.f32.mrb[0].mxu0
    %v1774 = vadd.f32 0.0, %v1773
    %v1775 = vpop.f32.mrb[0].mxu0
    %1776 = vdwg.mxu0
    %v1777 = vadd.f32 %v1579, %v1763
    %v1778 = vadd.f32 %v1582, %v1766
    %v1779 = vadd.f32 %v1587, %v1771
    %v1780 = vadd.f32 %v1590, %v1774
    %v1781 = vld [vmem:[%s10] sm:$0x1]
    %v1783 = vlaneseq
    %v1784 = vshrl.u32 %v1783, 7
    %v1785 = vsub.s32 0, %v1784
    %v1786 = vrot.slane %v1781, %v1785
    %v1788 = vadd.f32 %v1777, %v1786
    %v1789 = vadd.f32 %v1778, %v1786
    %v1790 = vadd.f32 %v1779, %v1786
    %v1791 = vadd.f32 %v1780, %v1786
    %v1792 = vmax.f32 %v1788, 0.0
    %v1793 = vmax.f32 %v1789, 0.0
    %v1794 = vmax.f32 %v1790, 0.0
    %v1795 = vmax.f32 %v1791, 0.0
    %v1796 = vpack.c.bf16 %v1793, %v1792
    %v1797 = vpack.c.bf16 %v1795, %v1794
    %v1798 = vld [vmem:[%s11] sm:$0xf]
    %v1799 = vld [vmem:[%s11 + $0x4] sm:$0xf]
    %v1800 = vld [vmem:[%s11 + $0x8] sm:$0xf]
    %v1801 = vld [vmem:[%s11 + $0xc] sm:$0xf]
    %v1802 = vld [vmem:[%s11 + $0x10] sm:$0xf]
    %v1803 = vld [vmem:[%s11 + $0x14] sm:$0xf]
    %v1804 = vld [vmem:[%s11 + $0x18] sm:$0xf]
    %v1805 = vld [vmem:[%s11 + $0x1c] sm:$0xf]
    %v1814 = vunpack.c.l.b16 %v1798
    %v1815 = vunpack.c.l.b16 %v1799
    %v1816 = vunpack.c.l.b16 %v1800
    %v1817 = vunpack.c.l.b16 %v1801
    %v1818 = vunpack.c.l.b16 %v1802
    %v1819 = vunpack.c.l.b16 %v1803
    %v1820 = vunpack.c.l.b16 %v1804
    %v1821 = vunpack.c.l.b16 %v1805
    %v1822 = vpack.c.b16 %v1815, %v1814
    %v1823 = vpack.c.b16 %v1817, %v1816
    %v1824 = vpack.c.b16 %v1819, %v1818
    %v1825 = vpack.c.b16 %v1821, %v1820
    %v1831 = vsel %vm62, %v1796, 0
    %v1834 = vsel %vm62, %v1797, 0
    %1836 = vmatprep.subr.bf16.mxu0 0
    %1837 = vmatpush1.bf16.msra.mxu0 %v1822
    %1838 = vmatprep.subr.bf16.mxu0 0
    %1839 = vmatpush1.bf16.msra.mxu0 %v1823
    %1840 = vmatprep.subr.bf16.mxu0 0
    %1841 = vmatpush1.bf16.msra.mxu0 %v1824
    %1842 = vmatprep.subr.bf16.mxu0 0
    %1843 = vmatpush1.bf16.msra.mxu0 %v1825
    %1844 = vmatprep.subr.bf16.mxu0 0
    %1845 = vmatpush1.bf16.msra.mxu0 0
    %1846 = vmatprep.subr.bf16.mxu0 0
    %1847 = vmatpush1.bf16.msra.mxu0 0
    %1848 = vmatprep.subr.bf16.mxu0 0
    %1849 = vmatpush1.bf16.msra.mxu0 0
    %1850 = vmatprep.subr.bf16.mxu0 0
    %1851 = vmatpush1.bf16.msra.mxu0 0
    %1852 = vmatprep.subr.bf16.mxu0 0
    %1853 = vmatpush1.bf16.msra.mxu0 0
    %1854 = vmatprep.subr.bf16.mxu0 0
    %1855 = vmatpush1.bf16.msra.mxu0 0
    %1856 = vmatprep.subr.bf16.mxu0 0
    %1857 = vmatpush1.bf16.msra.mxu0 0
    %1858 = vmatprep.subr.bf16.mxu0 0
    %1859 = vmatpush1.bf16.msra.mxu0 0
    %1860 = vmatprep.subr.bf16.mxu0 0
    %1861 = vmatpush1.bf16.msra.mxu0 0
    %1862 = vmatprep.subr.bf16.mxu0 0
    %1863 = vmatpush1.bf16.msra.mxu0 0
    %1864 = vmatprep.subr.bf16.mxu0 0
    %1865 = vmatpush1.bf16.msra.mxu0 0
    %1866 = vmatprep.subr.bf16.mxu0 0
    %1867 = vmatpush1.bf16.msra.mxu0 0
    %1868 = vmatprep.mubr.bf16.mxu0 0
    %1869 = vmatmul.mubr.bf16.gmra.mrb[0].mxu0 %v1831
    %v1870 = vpop.f32.mrb[0].mxu0
    %v1871 = vadd.f32 0.0, %v1870
    %v1872 = vpop.f32.mrb[0].mxu0
    %v1873 = vpop.f32.mrb[0].mxu0
    %v1874 = vadd.f32 0.0, %v1873
    %v1875 = vpop.f32.mrb[0].mxu0
    %1876 = vmatprep.mubr.bf16.mxu0 0
    %1877 = vmatmul.mubr.bf16.gmra.mrb[0].mxu0 %v1834
    %v1878 = vpop.f32.mrb[0].mxu0
    %v1879 = vadd.f32 0.0, %v1878
    %v1880 = vpop.f32.mrb[0].mxu0
    %v1881 = vpop.f32.mrb[0].mxu0
    %v1882 = vadd.f32 0.0, %v1881
    %v1883 = vpop.f32.mrb[0].mxu0
    %1884 = vdwg.mxu0
    %v1885 = vld [vmem:[%s12] sm:$0xff]
    %v1886 = vld [vmem:[%s12 + $0x8] sm:$0xff]
    %v1887 = vld [vmem:[%s12 + $0x10] sm:$0xff]
    %v1888 = vld [vmem:[%s12 + $0x18] sm:$0xff]
    %v1889 = vld [vmem:[%s12 + $0x20] sm:$0xff]
    %v1890 = vld [vmem:[%s12 + $0x28] sm:$0xff]
    %v1891 = vld [vmem:[%s12 + $0x30] sm:$0xff]
    %v1892 = vld [vmem:[%s12 + $0x38] sm:$0xff]
    %s1893 = sld [smem:[#allocation2]]
    %v1894 = vstv %s1893
    %vm1895 = vcmask 130048
    %v1897 = vsel %vm1895, %v1885, 0
    %v1900 = vsel %vm1895, %v1886, 0
    %v1903 = vsel %vm1895, %v1887, 0
    %v1906 = vsel %vm1895, %v1888, 0
    %v1909 = vsel %vm1895, %v1889, 0
    %v1912 = vsel %vm1895, %v1890, 0
    %v1915 = vsel %vm1895, %v1891, 0
    %v1918 = vsel %vm1895, %v1892, 0
    %1920 = vmatprep.subr.mxu0 0.0
    %1921 = vmatpush1.msra.mxu0 %v1871
    %1922 = vmatprep.subr.mxu0 0.0
    %1923 = vmatpush1.msra.mxu0 %v1874
    %1924 = vmatprep.subr.mxu0 0.0
    %1925 = vmatpush1.msra.mxu0 0.0
    %1926 = vmatprep.subr.mxu0 0.0
    %1927 = vmatpush1.msra.mxu0 0.0
    %1928 = vmatprep.subr.mxu0 0.0
    %1929 = vmatpush1.msra.mxu0 0.0
    %1930 = vmatprep.subr.mxu0 0.0
    %1931 = vmatpush1.msra.mxu0 0.0
    %1932 = vmatprep.subr.mxu0 0.0
    %1933 = vmatpush1.msra.mxu0 0.0
    %1934 = vmatprep.subr.mxu0 0.0
    %1935 = vmatpush1.msra.mxu0 0.0
    %1936 = vmatprep.subr.mxu0 0.0
    %1937 = vmatpush1.msra.mxu0 0.0
    %1938 = vmatprep.subr.mxu0 0.0
    %1939 = vmatpush1.msra.mxu0 0.0
    %1940 = vmatprep.subr.mxu0 0.0
    %1941 = vmatpush1.msra.mxu0 0.0
    %1942 = vmatprep.subr.mxu0 0.0
    %1943 = vmatpush1.msra.mxu0 0.0
    %1944 = vmatprep.subr.mxu0 0.0
    %1945 = vmatpush1.msra.mxu0 0.0
    %1946 = vmatprep.subr.mxu0 0.0
    %1947 = vmatpush1.msra.mxu0 0.0
    %1948 = vmatprep.subr.mxu0 0.0
    %1949 = vmatpush1.msra.mxu0 0.0
    %1950 = vmatprep.subr.mxu0 0.0
    %1951 = vmatpush1.msra.mxu0 0.0
    %1952 = vmatprep.subr.mxu0 0.0
    %1953 = vmatpush1.msra.mxu0 0.0
    %1954 = vmatprep.subr.mxu0 0.0
    %1955 = vmatpush1.msra.mxu0 0.0
    %1956 = vmatprep.subr.mxu0 0.0
    %1957 = vmatpush1.msra.mxu0 0.0
    %1958 = vmatprep.subr.mxu0 0.0
    %1959 = vmatpush1.msra.mxu0 0.0
    %1960 = vmatprep.subr.mxu0 0.0
    %1961 = vmatpush1.msra.mxu0 0.0
    %1962 = vmatprep.subr.mxu0 0.0
    %1963 = vmatpush1.msra.mxu0 0.0
    %1964 = vmatprep.subr.mxu0 0.0
    %1965 = vmatpush1.msra.mxu0 0.0
    %1966 = vmatprep.subr.mxu0 0.0
    %1967 = vmatpush1.msra.mxu0 0.0
    %1968 = vmatprep.subr.mxu0 0.0
    %1969 = vmatpush1.msra.mxu0 0.0
    %1970 = vmatprep.subr.mxu0 0.0
    %1971 = vmatpush1.msra.mxu0 0.0
    %1972 = vmatprep.subr.mxu0 0.0
    %1973 = vmatpush1.msra.mxu0 0.0
    %1974 = vmatprep.subr.mxu0 0.0
    %1975 = vmatpush1.msra.mxu0 0.0
    %1976 = vmatprep.subr.mxu0 0.0
    %1977 = vmatpush1.msra.mxu0 0.0
    %1978 = vmatprep.subr.mxu0 0.0
    %1979 = vmatpush1.msra.mxu0 0.0
    %1980 = vmatprep.subr.mxu0 0.0
    %1981 = vmatpush1.msra.mxu0 0.0
    %1982 = vmatprep.subr.mxu0 0.0
    %1983 = vmatpush1.msra.mxu0 0.0
    %1984 = vmatprep.mubr.f32.mxu0 0.0
    %1985 = vmatmul.mubr.f32.gmra.mrb[0].mxu0 %v1897
    %v1986 = vpop.f32.mrb[0].mxu0
    %v1987 = vadd.f32 %v1894, %v1986
    %v1988 = vpop.f32.mrb[0].mxu0
    %1989 = vmatprep.mubr.f32.mxu0 0.0
    %1990 = vmatmul.mubr.f32.gmra.mrb[0].mxu0 %v1900
    %v1991 = vpop.f32.mrb[0].mxu0
    %v1992 = vadd.f32 %v1894, %v1991
    %v1993 = vpop.f32.mrb[0].mxu0
    %1994 = vmatprep.mubr.f32.mxu0 0.0
    %1995 = vmatmul.mubr.f32.gmra.mrb[0].mxu0 %v1903
    %v1996 = vpop.f32.mrb[0].mxu0
    %v1997 = vadd.f32 %v1894, %v1996
    %v1998 = vpop.f32.mrb[0].mxu0
    %1999 = vmatprep.mubr.f32.mxu0 0.0
    %2000 = vmatmul.mubr.f32.gmra.mrb[0].mxu0 %v1906
    %v2001 = vpop.f32.mrb[0].mxu0
    %v2002 = vadd.f32 %v1894, %v2001
    %v2003 = vpop.f32.mrb[0].mxu0
    %2004 = vmatprep.mubr.f32.mxu0 0.0
    %2005 = vmatmul.mubr.f32.gmra.mrb[0].mxu0 %v1909
    %v2006 = vpop.f32.mrb[0].mxu0
    %v2007 = vadd.f32 %v1894, %v2006
    %v2008 = vpop.f32.mrb[0].mxu0
    %2009 = vmatprep.mubr.f32.mxu0 0.0
    %2010 = vmatmul.mubr.f32.gmra.mrb[0].mxu0 %v1912
    %v2011 = vpop.f32.mrb[0].mxu0
    %v2012 = vadd.f32 %v1894, %v2011
    %v2013 = vpop.f32.mrb[0].mxu0
    %2014 = vmatprep.mubr.f32.mxu0 0.0
    %2015 = vmatmul.mubr.f32.gmra.mrb[0].mxu0 %v1915
    %v2016 = vpop.f32.mrb[0].mxu0
    %v2017 = vadd.f32 %v1894, %v2016
    %v2018 = vpop.f32.mrb[0].mxu0
    %2019 = vmatprep.mubr.f32.mxu0 0.0
    %2020 = vmatmul.mubr.f32.gmra.mrb[0].mxu0 %v1918
    %v2021 = vpop.f32.mrb[0].mxu0
    %v2022 = vadd.f32 %v1894, %v2021
    %v2023 = vpop.f32.mrb[0].mxu0
    %2024 = vdwg.mxu0
    %2025 = vst.msk [vmem:[#allocation3] sm:$0xff] %vm62, %v1987
    %2026 = vst.msk [vmem:[#allocation3 + $0x8] sm:$0xff] %vm62, %v1992
    %2027 = vst.msk [vmem:[#allocation3 + $0x10] sm:$0xff] %vm62, %v1997
    %2028 = vst.msk [vmem:[#allocation3 + $0x18] sm:$0xff] %vm62, %v2002
    %2029 = vst.msk [vmem:[#allocation3 + $0x20] sm:$0xff] %vm62, %v2007
    %2030 = vst.msk [vmem:[#allocation3 + $0x28] sm:$0xff] %vm62, %v2012
    %2031 = vst.msk [vmem:[#allocation3 + $0x30] sm:$0xff] %vm62, %v2017
    %2032 = vst.msk [vmem:[#allocation3 + $0x38] sm:$0xff] %vm62, %v2022
    %v2033 = vld [vmem:[%s12] sm:$0xff]
    %v2034 = vld [vmem:[%s12 + $0x8] sm:$0xff]
    %v2035 = vld [vmem:[%s12 + $0x10] sm:$0xff]
    %v2036 = vld [vmem:[%s12 + $0x18] sm:$0xff]
    %v2037 = vld [vmem:[%s12 + $0x20] sm:$0xff]
    %v2038 = vld [vmem:[%s12 + $0x28] sm:$0xff]
    %v2039 = vld [vmem:[%s12 + $0x30] sm:$0xff]
    %v2040 = vld [vmem:[%s12 + $0x38] sm:$0xff]
    %s2041 = sld [smem:[#allocation2]]
    %v2042 = vstv %s2041
    %v2044 = vsel %vm1895, %v2033, 0
    %v2047 = vsel %vm1895, %v2034, 0
    %v2050 = vsel %vm1895, %v2035, 0
    %v2053 = vsel %vm1895, %v2036, 0
    %v2056 = vsel %vm1895, %v2037, 0
    %v2059 = vsel %vm1895, %v2038, 0
    %v2062 = vsel %vm1895, %v2039, 0
    %v2065 = vsel %vm1895, %v2040, 0
    %2067 = vmatprep.subr.mxu0 0.0
    %2068 = vmatpush1.msra.mxu0 %v1879
    %2069 = vmatprep.subr.mxu0 0.0
    %2070 = vmatpush1.msra.mxu0 %v1882
    %2071 = vmatprep.subr.mxu0 0.0
    %2072 = vmatpush1.msra.mxu0 0.0
    %2073 = vmatprep.subr.mxu0 0.0
    %2074 = vmatpush1.msra.mxu0 0.0
    %2075 = vmatprep.subr.mxu0 0.0
    %2076 = vmatpush1.msra.mxu0 0.0
    %2077 = vmatprep.subr.mxu0 0.0
    %2078 = vmatpush1.msra.mxu0 0.0
    %2079 = vmatprep.subr.mxu0 0.0
    %2080 = vmatpush1.msra.mxu0 0.0
    %2081 = vmatprep.subr.mxu0 0.0
    %2082 = vmatpush1.msra.mxu0 0.0
    %2083 = vmatprep.subr.mxu0 0.0
    %2084 = vmatpush1.msra.mxu0 0.0
    %2085 = vmatprep.subr.mxu0 0.0
    %2086 = vmatpush1.msra.mxu0 0.0
    %2087 = vmatprep.subr.mxu0 0.0
    %2088 = vmatpush1.msra.mxu0 0.0
    %2089 = vmatprep.subr.mxu0 0.0
    %2090 = vmatpush1.msra.mxu0 0.0
    %2091 = vmatprep.subr.mxu0 0.0
    %2092 = vmatpush1.msra.mxu0 0.0
    %2093 = vmatprep.subr.mxu0 0.0
    %2094 = vmatpush1.msra.mxu0 0.0
    %2095 = vmatprep.subr.mxu0 0.0
    %2096 = vmatpush1.msra.mxu0 0.0
    %2097 = vmatprep.subr.mxu0 0.0
    %2098 = vmatpush1.msra.mxu0 0.0
    %2099 = vmatprep.subr.mxu0 0.0
    %2100 = vmatpush1.msra.mxu0 0.0
    %2101 = vmatprep.subr.mxu0 0.0
    %2102 = vmatpush1.msra.mxu0 0.0
    %2103 = vmatprep.subr.mxu0 0.0
    %2104 = vmatpush1.msra.mxu0 0.0
    %2105 = vmatprep.subr.mxu0 0.0
    %2106 = vmatpush1.msra.mxu0 0.0
    %2107 = vmatprep.subr.mxu0 0.0
    %2108 = vmatpush1.msra.mxu0 0.0
    %2109 = vmatprep.subr.mxu0 0.0
    %2110 = vmatpush1.msra.mxu0 0.0
    %2111 = vmatprep.subr.mxu0 0.0
    %2112 = vmatpush1.msra.mxu0 0.0
    %2113 = vmatprep.subr.mxu0 0.0
    %2114 = vmatpush1.msra.mxu0 0.0
    %2115 = vmatprep.subr.mxu0 0.0
    %2116 = vmatpush1.msra.mxu0 0.0
    %2117 = vmatprep.subr.mxu0 0.0
    %2118 = vmatpush1.msra.mxu0 0.0
    %2119 = vmatprep.subr.mxu0 0.0
    %2120 = vmatpush1.msra.mxu0 0.0
    %2121 = vmatprep.subr.mxu0 0.0
    %2122 = vmatpush1.msra.mxu0 0.0
    %2123 = vmatprep.subr.mxu0 0.0
    %2124 = vmatpush1.msra.mxu0 0.0
    %2125 = vmatprep.subr.mxu0 0.0
    %2126 = vmatpush1.msra.mxu0 0.0
    %2127 = vmatprep.subr.mxu0 0.0
    %2128 = vmatpush1.msra.mxu0 0.0
    %2129 = vmatprep.subr.mxu0 0.0
    %2130 = vmatpush1.msra.mxu0 0.0
    %2131 = vmatprep.mubr.f32.mxu0 0.0
    %2132 = vmatmul.mubr.f32.gmra.mrb[0].mxu0 %v2044
    %v2133 = vpop.f32.mrb[0].mxu0
    %v2134 = vadd.f32 %v2042, %v2133
    %v2135 = vpop.f32.mrb[0].mxu0
    %2136 = vmatprep.mubr.f32.mxu0 0.0
    %2137 = vmatmul.mubr.f32.gmra.mrb[0].mxu0 %v2047
    %v2138 = vpop.f32.mrb[0].mxu0
    %v2139 = vadd.f32 %v2042, %v2138
    %v2140 = vpop.f32.mrb[0].mxu0
    %2141 = vmatprep.mubr.f32.mxu0 0.0
    %2142 = vmatmul.mubr.f32.gmra.mrb[0].mxu0 %v2050
    %v2143 = vpop.f32.mrb[0].mxu0
    %v2144 = vadd.f32 %v2042, %v2143
    %v2145 = vpop.f32.mrb[0].mxu0
    %2146 = vmatprep.mubr.f32.mxu0 0.0
    %2147 = vmatmul.mubr.f32.gmra.mrb[0].mxu0 %v2053
    %v2148 = vpop.f32.mrb[0].mxu0
    %v2149 = vadd.f32 %v2042, %v2148
    %v2150 = vpop.f32.mrb[0].mxu0
    %2151 = vmatprep.mubr.f32.mxu0 0.0
    %2152 = vmatmul.mubr.f32.gmra.mrb[0].mxu0 %v2056
    %v2153 = vpop.f32.mrb[0].mxu0
    %v2154 = vadd.f32 %v2042, %v2153
    %v2155 = vpop.f32.mrb[0].mxu0
    %2156 = vmatprep.mubr.f32.mxu0 0.0
    %2157 = vmatmul.mubr.f32.gmra.mrb[0].mxu0 %v2059
    %v2158 = vpop.f32.mrb[0].mxu0
    %v2159 = vadd.f32 %v2042, %v2158
    %v2160 = vpop.f32.mrb[0].mxu0
    %2161 = vmatprep.mubr.f32.mxu0 0.0
    %2162 = vmatmul.mubr.f32.gmra.mrb[0].mxu0 %v2062
    %v2163 = vpop.f32.mrb[0].mxu0
    %v2164 = vadd.f32 %v2042, %v2163
    %v2165 = vpop.f32.mrb[0].mxu0
    %2166 = vmatprep.mubr.f32.mxu0 0.0
    %2167 = vmatmul.mubr.f32.gmra.mrb[0].mxu0 %v2065
    %v2168 = vpop.f32.mrb[0].mxu0
    %v2169 = vadd.f32 %v2042, %v2168
    %v2170 = vpop.f32.mrb[0].mxu0
    %2171 = vdwg.mxu0
    %s2172 = scalar_lea.vmem [#allocation3], 64
    %2173 = vst.msk [vmem:[%s2172] sm:$0xff] %vm62, %v2134
    %2174 = vst.msk [vmem:[%s2172 + $0x8] sm:$0xff] %vm62, %v2139
    %2175 = vst.msk [vmem:[%s2172 + $0x10] sm:$0xff] %vm62, %v2144
    %2176 = vst.msk [vmem:[%s2172 + $0x18] sm:$0xff] %vm62, %v2149
    %2177 = vst.msk [vmem:[%s2172 + $0x20] sm:$0xff] %vm62, %v2154
    %2178 = vst.msk [vmem:[%s2172 + $0x28] sm:$0xff] %vm62, %v2159
    %2179 = vst.msk [vmem:[%s2172 + $0x30] sm:$0xff] %vm62, %v2164
    %2180 = vst.msk [vmem:[%s2172 + $0x38] sm:$0xff] %vm62, %v2169
    // Predicated region
    $region58: #{tpu_custom_call.1} parent=1 // pred_check
      _
    $region59: #{tpu_custom_call.1} parent=1 // pred_check_branch
      %2182 = sbr.rel (0) target = $region61
    $region60: #{tpu_custom_call.1} parent=1 // pred_region
      %s2184 = ssub.s32 2048, 2048
      %2185 = vsyncadd [#allocation4], %s2184
      %s2186 = sshll.u32 [#allocation3], 4
      %s2187 = int_to_ptr.vmem [resolvable:$true] %s2186
      %2192 = dma.vmem_to_hbm [thread:$0]  %s2187, 2048, %s14, [#allocation4], 128, 128, 8
    $region61: #{tpu_custom_call.1} parent=1 // pred_fallthru
      _
    // Predicated region
    $region62: #{tpu_custom_call.1} parent=1 // pred_check
      _
    $region63: #{tpu_custom_call.1} parent=1 // pred_check_branch
      %2194 = sbr.rel (0) target = $region65
    $region64: #{tpu_custom_call.1} parent=1 // pred_region
      %2195 = dma.done [#allocation4], 2048
    $region65: #{tpu_custom_call.1} parent=1 // pred_fallthru
      _
    %2196 = vsyncpa [#allocation4], 1

</llo_original>
